<compile_context>
chip_gen: v7x
topology: tpu7x:2x2x1
jax: 0.10.0
libtpu: 0.0.40
codegen_flags: <defaults>
</compile_context>

<pallas_src>
import jax
import jax.numpy as jnp
from jax import lax
from jax.experimental import pallas as pl
from jax.experimental.pallas import tpu as pltpu

PAD = 2      # Conv2d(padding=2)
KSIZE = 2    # Conv2d(kernel_size=2)
EPS = 1e-5   # BatchNorm2d default eps


def convres_kernel(x_ref, gamma_ref, beta_ref, wrow_ref, brow_ref, alpha_ref,
                   o_ref, pad_ref):
    """Fused BN(batch stats) -> zero-pad -> 2x2 conv -> PReLU, whole batch.

    x_ref    : (N, C, H, W) raw input, VMEM (no wrapper-side pad/transpose).
    gamma_ref, beta_ref : (C,) BN affine params, SMEM scalars.
    wrow_ref : (C*K*K, 1, O*Wo) lane-packed conv weights, VMEM.
               wrow[(c*K+kh)*K+kw, 0, o*Wo + j] = conv_w[o, c, kh, kw].
    brow_ref : (1, 1, O*Wo) lane-packed conv bias, VMEM.
    alpha_ref: (1,) PReLU shared slope, SMEM.
    o_ref    : (N, Ho, O*Wo) lane-packed output, VMEM.
    pad_ref  : (N, Hp, Wp) VMEM scratch: zero-padded BN plane of one channel.
    """
    N, C, H, W = x_ref.shape
    _, Hp, Wp = pad_ref.shape
    _, Ho, OWo = o_ref.shape
    Wo = Wp - KSIZE + 1
    O = OWo // Wo

    inv_count = 1.0 / float(N * H * W)
    alpha = alpha_ref[0]

    # Zero the padded scratch ONCE; only its interior changes per channel, so
    # the zero ring ("BN, then zero-pad") survives all channel iterations.
    pad_ref[...] = jnp.zeros(pad_ref.shape, pad_ref.dtype)

    # Accumulator seeded with the lane-packed conv bias: (N, Ho, O*Wo).
    acc = jnp.broadcast_to(brow_ref[...], (N, Ho, OWo))

    for c in range(C):
        # --- BatchNorm2d: training-mode biased batch statistics -----------
        planes = [x_ref[n, c] for n in range(N)]              # each (H, W)
        mean = sum(jnp.sum(p) for p in planes) * inv_count
        cens = [p - mean for p in planes]
        var = sum(jnp.sum(p * p) for p in cens) * inv_count
        scale = gamma_ref[c] * lax.rsqrt(var + EPS)
        shift = beta_ref[c]

        # Write the normalized interior into the zero-padded scratch plane.
        for n in range(N):
            pad_ref[n, PAD:PAD + H, PAD:PAD + W] = cens[n] * scale + shift

        # --- 2x2 conv: 4 wide lane-packed FMAs per input channel ----------
        for kw in range(KSIZE):
            cols = pad_ref[:, :, kw:kw + Wo]                  # (N, Hp, Wo)
            tiled = jnp.concatenate([cols] * O, axis=-1)      # (N, Hp, O*Wo)
            for kh in range(KSIZE):
                r = (c * KSIZE + kh) * KSIZE + kw
                acc = acc + tiled[:, kh:kh + Ho, :] * wrow_ref[r]

    # PReLU (single shared slope) + one lane-dense store of the whole batch.
    o_ref[...] = jnp.where(acc > 0, acc, alpha * acc)


@jax.jit
def conv_res_forward(x_nchw, params):
    """ConvRes.forward: BatchNorm2d (batch stats) -> Conv2d(2, pad=2) -> PReLU."""
    gamma, beta = params["gamma"], params["beta"]
    conv_w, conv_b, alpha = params["conv_w"], params["conv_b"], params["alpha"]

    N, C, H, W = x_nchw.shape
    O = conv_w.shape[0]
    Hp, Wp = H + 2 * PAD, W + 2 * PAD
    Ho, Wo = Hp - KSIZE + 1, Wp - KSIZE + 1

    x = x_nchw.astype(jnp.float32)

    # Lane-packed conv weights: row (c,kh,kw) holds w[o,c,kh,kw] replicated
    # across output channel o's Wo-wide lane segment.  Tiny (16 x 152).
    wt = conv_w.astype(jnp.float32).transpose(1, 2, 3, 0)     # (C, K, K, O)
    wt = wt.reshape(C * KSIZE * KSIZE, O)
    w_rows = jnp.repeat(wt, Wo, axis=1).reshape(C * KSIZE * KSIZE, 1, O * Wo)
    b_row = jnp.repeat(conv_b.astype(jnp.float32), Wo).reshape(1, 1, O * Wo)

    smem = pl.BlockSpec(memory_space=pltpu.MemorySpace.SMEM)
    vmem = pl.BlockSpec(memory_space=pltpu.MemorySpace.VMEM)

    out_flat = pl.pallas_call(
        convres_kernel,
        out_shape=jax.ShapeDtypeStruct((N, Ho, O * Wo), jnp.float32),
        in_specs=[vmem, smem, smem, vmem, vmem, smem],
        out_specs=vmem,
        scratch_shapes=[pltpu.VMEM((N, Hp, Wp), jnp.float32)],
    )(x, gamma.astype(jnp.float32), beta.astype(jnp.float32),
      w_rows, b_row, alpha.astype(jnp.float32))

    # Unpack the lane-packed (N, Ho, O*Wo) slab back to NCHW (~23 KB, trivial).
    return out_flat.reshape(N, Ho, O, Wo).transpose(0, 2, 1, 3)


def conv_res_reference(x, params):
    """Pure-JAX reference mirroring the torch forward (for verification)."""
    gamma, beta = params["gamma"], params["beta"]
    conv_w, conv_b, alpha = params["conv_w"], params["conv_b"], params["alpha"]
    mean = jnp.mean(x, axis=(0, 2, 3), keepdims=True)
    var = jnp.var(x, axis=(0, 2, 3), keepdims=True)
    y = ((x - mean) / jnp.sqrt(var + EPS)) * gamma.reshape(1, -1, 1, 1) \
        + beta.reshape(1, -1, 1, 1)
    out = lax.conv_general_dilated(
        y, conv_w, window_strides=(1, 1),
        padding=((PAD, PAD), (PAD, PAD)),
        dimension_numbers=("NCHW", "OIHW", "NCHW"))
    out = out + conv_b.reshape(1, -1, 1, 1)
    return jnp.where(out > 0, out, alpha * out)


if __name__ == "__main__":
    key = jax.random.PRNGKey(0)
    k_x, k_g, k_b, k_w, k_cb = jax.random.split(key, 5)

    N, C, H, W = 2, 4, 16, 16     # insize = 4
    O = 8                         # outsize = 8

    x = jax.random.normal(k_x, (N, C, H, W), jnp.float32)
    params = dict(
        gamma=1.0 + 0.1 * jax.random.normal(k_g, (C,), jnp.float32),
        beta=0.1 * jax.random.normal(k_b, (C,), jnp.float32),
        conv_w=jax.random.normal(k_w, (O, C, KSIZE, KSIZE), jnp.float32)
        * (1.0 / jnp.sqrt(C * KSIZE * KSIZE)),
        conv_b=0.1 * jax.random.normal(k_cb, (O,), jnp.float32),
        alpha=jnp.full((1,), 0.25, jnp.float32),   # PyTorch PReLU default init
    )
    # TODO(synk): nn.Dropout(drate) is constructed in __init__ but never added
    # to the Sequential in the original module, so it is intentionally omitted.

    out = jax.block_until_ready(conv_res_forward(x, params))
    ref = jax.block_until_ready(conv_res_reference(x, params))

    Ho = H + 2 * PAD - KSIZE + 1
    assert out.shape == (N, O, Ho, Ho), out.shape
    err = float(jnp.max(jnp.abs(out - ref)))
    assert jnp.allclose(out, ref, rtol=1e-3, atol=1e-3), err
    print("KERNEL_OK")
</pallas_src>

<mosaic_0001>
module attributes {stable_mosaic.version = 11 : i64} {
  func.func @convres_kernel(%arg0: memref<2x4x16x16xf32, #tpu.memory_space<vmem>>, %arg1: memref<4xf32, #tpu.memory_space<smem>>, %arg2: memref<4xf32, #tpu.memory_space<smem>>, %arg3: memref<16x1x152xf32, #tpu.memory_space<vmem>>, %arg4: memref<1x1x152xf32, #tpu.memory_space<vmem>>, %arg5: memref<1xf32, #tpu.memory_space<smem>>, %arg6: memref<2x19x152xf32, #tpu.memory_space<vmem>>, %arg7: memref<2x20x20xf32, #tpu.memory_space<vmem>>) attributes {dimension_semantics = [], scalar_prefetch = 0 : i64, scratch_operands = 1 : i64, tpu.core_type = #tpu.core_type<tc>} {
    %c0 = arith.constant 0 : index
    %0 = memref.load %arg5[%c0] : memref<1xf32, #tpu.memory_space<smem>>
    %cst = arith.constant 0.000000e+00 : f32
    %1 = vector.broadcast %cst : f32 to vector<2x20x20xf32>
    %c0_0 = arith.constant 0 : index
    %c0_1 = arith.constant 0 : index
    %c0_2 = arith.constant 0 : index
    %2 = vector.load %arg7[%c0_0, %c0_1, %c0_2] : memref<2x20x20xf32, #tpu.memory_space<vmem>>, vector<2x20x20xf32>
    tpu.vector_store %arg7[%c0_0, %c0_1, %c0_2], %1 {strides = array<i32>} : memref<2x20x20xf32, #tpu.memory_space<vmem>>, vector<2x20x20xf32>,
    %c0_3 = arith.constant 0 : index
    %c0_4 = arith.constant 0 : index
    %c0_5 = arith.constant 0 : index
    %3 = vector.load %arg4[%c0_3, %c0_4, %c0_5] : memref<1x1x152xf32, #tpu.memory_space<vmem>>, vector<1x1x152xf32>
    %4 = vector.shape_cast %3 : vector<1x1x152xf32> to vector<1x1x152xf32>
    %5 = vector.broadcast %4 : vector<1x1x152xf32> to vector<2x19x152xf32>
    %c0_6 = arith.constant 0 : index
    %c0_7 = arith.constant 0 : index
    %c0_8 = arith.constant 0 : index
    %c0_9 = arith.constant 0 : index
    %6 = vector.load %arg0[%c0_6, %c0_7, %c0_8, %c0_9] : memref<2x4x16x16xf32, #tpu.memory_space<vmem>>, vector<1x1x16x16xf32>
    %7 = vector.shape_cast %6 : vector<1x1x16x16xf32> to vector<16x16xf32>
    %c1 = arith.constant 1 : index
    %c0_10 = arith.constant 0 : index
    %c0_11 = arith.constant 0 : index
    %c0_12 = arith.constant 0 : index
    %8 = vector.load %arg0[%c1, %c0_10, %c0_11, %c0_12] : memref<2x4x16x16xf32, #tpu.memory_space<vmem>>, vector<1x1x16x16xf32>
    %9 = vector.shape_cast %8 : vector<1x1x16x16xf32> to vector<16x16xf32>
    %10 = vector.shape_cast %7 : vector<16x16xf32> to vector<1x16x16xf32>
    %cst_13 = arith.constant dense<0.000000e+00> : vector<1xf32>
    %11 = vector.multi_reduction <add>, %10, %cst_13 [1, 2] : vector<1x16x16xf32> to vector<1xf32>
    %12 = vector.shape_cast %11 : vector<1xf32> to vector<1x1x1xf32>
    %13 = vector.extract %12[0, 0, 0] : f32 from vector<1x1x1xf32>
    %cst_14 = arith.constant 0.000000e+00 : f32
    %14 = arith.addf %cst_14, %13 : f32
    %15 = vector.shape_cast %9 : vector<16x16xf32> to vector<1x16x16xf32>
    %cst_15 = arith.constant dense<0.000000e+00> : vector<1xf32>
    %16 = vector.multi_reduction <add>, %15, %cst_15 [1, 2] : vector<1x16x16xf32> to vector<1xf32>
    %17 = vector.shape_cast %16 : vector<1xf32> to vector<1x1x1xf32>
    %18 = vector.extract %17[0, 0, 0] : f32 from vector<1x1x1xf32>
    %19 = arith.addf %14, %18 : f32
    %cst_16 = arith.constant 0.001953125 : f32
    %20 = arith.mulf %19, %cst_16 : f32
    %21 = vector.broadcast %20 : f32 to vector<16x16xf32>
    %22 = arith.subf %7, %21 : vector<16x16xf32>
    %23 = vector.broadcast %20 : f32 to vector<16x16xf32>
    %24 = arith.subf %9, %23 : vector<16x16xf32>
    %25 = arith.mulf %22, %22 : vector<16x16xf32>
    %26 = vector.shape_cast %25 : vector<16x16xf32> to vector<1x16x16xf32>
    %cst_17 = arith.constant dense<0.000000e+00> : vector<1xf32>
    %27 = vector.multi_reduction <add>, %26, %cst_17 [1, 2] : vector<1x16x16xf32> to vector<1xf32>
    %28 = vector.shape_cast %27 : vector<1xf32> to vector<1x1x1xf32>
    %29 = vector.extract %28[0, 0, 0] : f32 from vector<1x1x1xf32>
    %cst_18 = arith.constant 0.000000e+00 : f32
    %30 = arith.addf %cst_18, %29 : f32
    %31 = arith.mulf %24, %24 : vector<16x16xf32>
    %32 = vector.shape_cast %31 : vector<16x16xf32> to vector<1x16x16xf32>
    %cst_19 = arith.constant dense<0.000000e+00> : vector<1xf32>
    %33 = vector.multi_reduction <add>, %32, %cst_19 [1, 2] : vector<1x16x16xf32> to vector<1xf32>
    %34 = vector.shape_cast %33 : vector<1xf32> to vector<1x1x1xf32>
    %35 = vector.extract %34[0, 0, 0] : f32 from vector<1x1x1xf32>
    %36 = arith.addf %30, %35 : f32
    %cst_20 = arith.constant 0.001953125 : f32
    %37 = arith.mulf %36, %cst_20 : f32
    %c0_21 = arith.constant 0 : index
    %38 = memref.load %arg1[%c0_21] : memref<4xf32, #tpu.memory_space<smem>>
    %cst_22 = arith.constant 9.99999974E-6 : f32
    %39 = arith.addf %37, %cst_22 : f32
    %40 = math.rsqrt %39 : f32
    %41 = arith.mulf %38, %40 : f32
    %c0_23 = arith.constant 0 : index
    %42 = memref.load %arg2[%c0_23] : memref<4xf32, #tpu.memory_space<smem>>
    %43 = vector.broadcast %41 : f32 to vector<16x16xf32>
    %44 = arith.mulf %22, %43 : vector<16x16xf32>
    %45 = vector.broadcast %42 : f32 to vector<16x16xf32>
    %46 = arith.addf %44, %45 : vector<16x16xf32>
    %c0_24 = arith.constant 0 : index
    %c2 = arith.constant 2 : index
    %c2_25 = arith.constant 2 : index
    %47 = vector.load %arg7[%c0_24, %c2, %c2_25] : memref<2x20x20xf32, #tpu.memory_space<vmem>>, vector<1x16x16xf32>
    %48 = vector.shape_cast %47 : vector<1x16x16xf32> to vector<16x16xf32>
    %49 = vector.shape_cast %46 : vector<16x16xf32> to vector<1x16x16xf32>
    tpu.vector_store %arg7[%c0_24, %c2, %c2_25], %49 {strides = array<i32>} : memref<2x20x20xf32, #tpu.memory_space<vmem>>, vector<1x16x16xf32>,
    %50 = vector.broadcast %41 : f32 to vector<16x16xf32>
    %51 = arith.mulf %24, %50 : vector<16x16xf32>
    %52 = vector.broadcast %42 : f32 to vector<16x16xf32>
    %53 = arith.addf %51, %52 : vector<16x16xf32>
    %c1_26 = arith.constant 1 : index
    %c2_27 = arith.constant 2 : index
    %c2_28 = arith.constant 2 : index
    %54 = vector.load %arg7[%c1_26, %c2_27, %c2_28] : memref<2x20x20xf32, #tpu.memory_space<vmem>>, vector<1x16x16xf32>
    %55 = vector.shape_cast %54 : vector<1x16x16xf32> to vector<16x16xf32>
    %56 = vector.shape_cast %53 : vector<16x16xf32> to vector<1x16x16xf32>
    tpu.vector_store %arg7[%c1_26, %c2_27, %c2_28], %56 {strides = array<i32>} : memref<2x20x20xf32, #tpu.memory_space<vmem>>, vector<1x16x16xf32>,
    %c0_29 = arith.constant 0 : index
    %c0_30 = arith.constant 0 : index
    %c0_31 = arith.constant 0 : index
    %57 = vector.load %arg7[%c0_29, %c0_30, %c0_31] : memref<2x20x20xf32, #tpu.memory_space<vmem>>, vector<2x20x19xf32>
    %58 = tpu.concatenate %57, %57, %57, %57, %57, %57, %57, %57 in 2 : vector<2x20x19xf32>, vector<2x20x19xf32>, vector<2x20x19xf32>, vector<2x20x19xf32>, vector<2x20x19xf32>, vector<2x20x19xf32>, vector<2x20x19xf32>, vector<2x20x19xf32> -> vector<2x20x152xf32>
    %59 = vector.extract_strided_slice %58 {offsets = [0, 0, 0], sizes = [2, 19, 152], strides = [1, 1, 1]} : vector<2x20x152xf32> to vector<2x19x152xf32>
    %c0_32 = arith.constant 0 : index
    %c0_33 = arith.constant 0 : index
    %c0_34 = arith.constant 0 : index
    %60 = vector.load %arg3[%c0_32, %c0_33, %c0_34] : memref<16x1x152xf32, #tpu.memory_space<vmem>>, vector<1x1x152xf32>
    %61 = vector.shape_cast %60 : vector<1x1x152xf32> to vector<1x152xf32>
    %62 = vector.shape_cast %61 : vector<1x152xf32> to vector<1x1x152xf32>
    %63 = vector.broadcast %62 : vector<1x1x152xf32> to vector<2x19x152xf32>
    %64 = arith.mulf %59, %63 : vector<2x19x152xf32>
    %65 = arith.addf %5, %64 : vector<2x19x152xf32>
    %66 = vector.extract_strided_slice %58 {offsets = [0, 1, 0], sizes = [2, 19, 152], strides = [1, 1, 1]} : vector<2x20x152xf32> to vector<2x19x152xf32>
    %c2_35 = arith.constant 2 : index
    %c0_36 = arith.constant 0 : index
    %c0_37 = arith.constant 0 : index
    %67 = vector.load %arg3[%c2_35, %c0_36, %c0_37] : memref<16x1x152xf32, #tpu.memory_space<vmem>>, vector<1x1x152xf32>
    %68 = vector.shape_cast %67 : vector<1x1x152xf32> to vector<1x152xf32>
    %69 = vector.shape_cast %68 : vector<1x152xf32> to vector<1x1x152xf32>
    %70 = vector.broadcast %69 : vector<1x1x152xf32> to vector<2x19x152xf32>
    %71 = arith.mulf %66, %70 : vector<2x19x152xf32>
    %72 = arith.addf %65, %71 : vector<2x19x152xf32>
    %c0_38 = arith.constant 0 : index
    %c0_39 = arith.constant 0 : index
    %c1_40 = arith.constant 1 : index
    %73 = vector.load %arg7[%c0_38, %c0_39, %c1_40] : memref<2x20x20xf32, #tpu.memory_space<vmem>>, vector<2x20x19xf32>
    %74 = tpu.concatenate %73, %73, %73, %73, %73, %73, %73, %73 in 2 : vector<2x20x19xf32>, vector<2x20x19xf32>, vector<2x20x19xf32>, vector<2x20x19xf32>, vector<2x20x19xf32>, vector<2x20x19xf32>, vector<2x20x19xf32>, vector<2x20x19xf32> -> vector<2x20x152xf32>
    %75 = vector.extract_strided_slice %74 {offsets = [0, 0, 0], sizes = [2, 19, 152], strides = [1, 1, 1]} : vector<2x20x152xf32> to vector<2x19x152xf32>
    %c1_41 = arith.constant 1 : index
    %c0_42 = arith.constant 0 : index
    %c0_43 = arith.constant 0 : index
    %76 = vector.load %arg3[%c1_41, %c0_42, %c0_43] : memref<16x1x152xf32, #tpu.memory_space<vmem>>, vector<1x1x152xf32>
    %77 = vector.shape_cast %76 : vector<1x1x152xf32> to vector<1x152xf32>
    %78 = vector.shape_cast %77 : vector<1x152xf32> to vector<1x1x152xf32>
    %79 = vector.broadcast %78 : vector<1x1x152xf32> to vector<2x19x152xf32>
    %80 = arith.mulf %75, %79 : vector<2x19x152xf32>
    %81 = arith.addf %72, %80 : vector<2x19x152xf32>
    %82 = vector.extract_strided_slice %74 {offsets = [0, 1, 0], sizes = [2, 19, 152], strides = [1, 1, 1]} : vector<2x20x152xf32> to vector<2x19x152xf32>
    %c3 = arith.constant 3 : index
    %c0_44 = arith.constant 0 : index
    %c0_45 = arith.constant 0 : index
    %83 = vector.load %arg3[%c3, %c0_44, %c0_45] : memref<16x1x152xf32, #tpu.memory_space<vmem>>, vector<1x1x152xf32>
    %84 = vector.shape_cast %83 : vector<1x1x152xf32> to vector<1x152xf32>
    %85 = vector.shape_cast %84 : vector<1x152xf32> to vector<1x1x152xf32>
    %86 = vector.broadcast %85 : vector<1x1x152xf32> to vector<2x19x152xf32>
    %87 = arith.mulf %82, %86 : vector<2x19x152xf32>
    %88 = arith.addf %81, %87 : vector<2x19x152xf32>
    %c0_46 = arith.constant 0 : index
    %c1_47 = arith.constant 1 : index
    %c0_48 = arith.constant 0 : index
    %c0_49 = arith.constant 0 : index
    %89 = vector.load %arg0[%c0_46, %c1_47, %c0_48, %c0_49] : memref<2x4x16x16xf32, #tpu.memory_space<vmem>>, vector<1x1x16x16xf32>
    %90 = vector.shape_cast %89 : vector<1x1x16x16xf32> to vector<16x16xf32>
    %c1_50 = arith.constant 1 : index
    %c1_51 = arith.constant 1 : index
    %c0_52 = arith.constant 0 : index
    %c0_53 = arith.constant 0 : index
    %91 = vector.load %arg0[%c1_50, %c1_51, %c0_52, %c0_53] : memref<2x4x16x16xf32, #tpu.memory_space<vmem>>, vector<1x1x16x16xf32>
    %92 = vector.shape_cast %91 : vector<1x1x16x16xf32> to vector<16x16xf32>
    %93 = vector.shape_cast %90 : vector<16x16xf32> to vector<1x16x16xf32>
    %cst_54 = arith.constant dense<0.000000e+00> : vector<1xf32>
    %94 = vector.multi_reduction <add>, %93, %cst_54 [1, 2] : vector<1x16x16xf32> to vector<1xf32>
    %95 = vector.shape_cast %94 : vector<1xf32> to vector<1x1x1xf32>
    %96 = vector.extract %95[0, 0, 0] : f32 from vector<1x1x1xf32>
    %cst_55 = arith.constant 0.000000e+00 : f32
    %97 = arith.addf %cst_55, %96 : f32
    %98 = vector.shape_cast %92 : vector<16x16xf32> to vector<1x16x16xf32>
    %cst_56 = arith.constant dense<0.000000e+00> : vector<1xf32>
    %99 = vector.multi_reduction <add>, %98, %cst_56 [1, 2] : vector<1x16x16xf32> to vector<1xf32>
    %100 = vector.shape_cast %99 : vector<1xf32> to vector<1x1x1xf32>
    %101 = vector.extract %100[0, 0, 0] : f32 from vector<1x1x1xf32>
    %102 = arith.addf %97, %101 : f32
    %cst_57 = arith.constant 0.001953125 : f32
    %103 = arith.mulf %102, %cst_57 : f32
    %104 = vector.broadcast %103 : f32 to vector<16x16xf32>
    %105 = arith.subf %90, %104 : vector<16x16xf32>
    %106 = vector.broadcast %103 : f32 to vector<16x16xf32>
    %107 = arith.subf %92, %106 : vector<16x16xf32>
    %108 = arith.mulf %105, %105 : vector<16x16xf32>
    %109 = vector.shape_cast %108 : vector<16x16xf32> to vector<1x16x16xf32>
    %cst_58 = arith.constant dense<0.000000e+00> : vector<1xf32>
    %110 = vector.multi_reduction <add>, %109, %cst_58 [1, 2] : vector<1x16x16xf32> to vector<1xf32>
    %111 = vector.shape_cast %110 : vector<1xf32> to vector<1x1x1xf32>
    %112 = vector.extract %111[0, 0, 0] : f32 from vector<1x1x1xf32>
    %cst_59 = arith.constant 0.000000e+00 : f32
    %113 = arith.addf %cst_59, %112 : f32
    %114 = arith.mulf %107, %107 : vector<16x16xf32>
    %115 = vector.shape_cast %114 : vector<16x16xf32> to vector<1x16x16xf32>
    %cst_60 = arith.constant dense<0.000000e+00> : vector<1xf32>
    %116 = vector.multi_reduction <add>, %115, %cst_60 [1, 2] : vector<1x16x16xf32> to vector<1xf32>
    %117 = vector.shape_cast %116 : vector<1xf32> to vector<1x1x1xf32>
    %118 = vector.extract %117[0, 0, 0] : f32 from vector<1x1x1xf32>
    %119 = arith.addf %113, %118 : f32
    %cst_61 = arith.constant 0.001953125 : f32
    %120 = arith.mulf %119, %cst_61 : f32
    %c1_62 = arith.constant 1 : index
    %121 = memref.load %arg1[%c1_62] : memref<4xf32, #tpu.memory_space<smem>>
    %cst_63 = arith.constant 9.99999974E-6 : f32
    %122 = arith.addf %120, %cst_63 : f32
    %123 = math.rsqrt %122 : f32
    %124 = arith.mulf %121, %123 : f32
    %c1_64 = arith.constant 1 : index
    %125 = memref.load %arg2[%c1_64] : memref<4xf32, #tpu.memory_space<smem>>
    %126 = vector.broadcast %124 : f32 to vector<16x16xf32>
    %127 = arith.mulf %105, %126 : vector<16x16xf32>
    %128 = vector.broadcast %125 : f32 to vector<16x16xf32>
    %129 = arith.addf %127, %128 : vector<16x16xf32>
    %c0_65 = arith.constant 0 : index
    %c2_66 = arith.constant 2 : index
    %c2_67 = arith.constant 2 : index
    %130 = vector.load %arg7[%c0_65, %c2_66, %c2_67] : memref<2x20x20xf32, #tpu.memory_space<vmem>>, vector<1x16x16xf32>
    %131 = vector.shape_cast %130 : vector<1x16x16xf32> to vector<16x16xf32>
    %132 = vector.shape_cast %129 : vector<16x16xf32> to vector<1x16x16xf32>
    tpu.vector_store %arg7[%c0_65, %c2_66, %c2_67], %132 {strides = array<i32>} : memref<2x20x20xf32, #tpu.memory_space<vmem>>, vector<1x16x16xf32>,
    %133 = vector.broadcast %124 : f32 to vector<16x16xf32>
    %134 = arith.mulf %107, %133 : vector<16x16xf32>
    %135 = vector.broadcast %125 : f32 to vector<16x16xf32>
    %136 = arith.addf %134, %135 : vector<16x16xf32>
    %c1_68 = arith.constant 1 : index
    %c2_69 = arith.constant 2 : index
    %c2_70 = arith.constant 2 : index
    %137 = vector.load %arg7[%c1_68, %c2_69, %c2_70] : memref<2x20x20xf32, #tpu.memory_space<vmem>>, vector<1x16x16xf32>
    %138 = vector.shape_cast %137 : vector<1x16x16xf32> to vector<16x16xf32>
    %139 = vector.shape_cast %136 : vector<16x16xf32> to vector<1x16x16xf32>
    tpu.vector_store %arg7[%c1_68, %c2_69, %c2_70], %139 {strides = array<i32>} : memref<2x20x20xf32, #tpu.memory_space<vmem>>, vector<1x16x16xf32>,
    %c0_71 = arith.constant 0 : index
    %c0_72 = arith.constant 0 : index
    %c0_73 = arith.constant 0 : index
    %140 = vector.load %arg7[%c0_71, %c0_72, %c0_73] : memref<2x20x20xf32, #tpu.memory_space<vmem>>, vector<2x20x19xf32>
    %141 = tpu.concatenate %140, %140, %140, %140, %140, %140, %140, %140 in 2 : vector<2x20x19xf32>, vector<2x20x19xf32>, vector<2x20x19xf32>, vector<2x20x19xf32>, vector<2x20x19xf32>, vector<2x20x19xf32>, vector<2x20x19xf32>, vector<2x20x19xf32> -> vector<2x20x152xf32>
    %142 = vector.extract_strided_slice %141 {offsets = [0, 0, 0], sizes = [2, 19, 152], strides = [1, 1, 1]} : vector<2x20x152xf32> to vector<2x19x152xf32>
    %c4 = arith.constant 4 : index
    %c0_74 = arith.constant 0 : index
    %c0_75 = arith.constant 0 : index
    %143 = vector.load %arg3[%c4, %c0_74, %c0_75] : memref<16x1x152xf32, #tpu.memory_space<vmem>>, vector<1x1x152xf32>
    %144 = vector.shape_cast %143 : vector<1x1x152xf32> to vector<1x152xf32>
    %145 = vector.shape_cast %144 : vector<1x152xf32> to vector<1x1x152xf32>
    %146 = vector.broadcast %145 : vector<1x1x152xf32> to vector<2x19x152xf32>
    %147 = arith.mulf %142, %146 : vector<2x19x152xf32>
    %148 = arith.addf %88, %147 : vector<2x19x152xf32>
    %149 = vector.extract_strided_slice %141 {offsets = [0, 1, 0], sizes = [2, 19, 152], strides = [1, 1, 1]} : vector<2x20x152xf32> to vector<2x19x152xf32>
    %c6 = arith.constant 6 : index
    %c0_76 = arith.constant 0 : index
    %c0_77 = arith.constant 0 : index
    %150 = vector.load %arg3[%c6, %c0_76, %c0_77] : memref<16x1x152xf32, #tpu.memory_space<vmem>>, vector<1x1x152xf32>
    %151 = vector.shape_cast %150 : vector<1x1x152xf32> to vector<1x152xf32>
    %152 = vector.shape_cast %151 : vector<1x152xf32> to vector<1x1x152xf32>
    %153 = vector.broadcast %152 : vector<1x1x152xf32> to vector<2x19x152xf32>
    %154 = arith.mulf %149, %153 : vector<2x19x152xf32>
    %155 = arith.addf %148, %154 : vector<2x19x152xf32>
    %c0_78 = arith.constant 0 : index
    %c0_79 = arith.constant 0 : index
    %c1_80 = arith.constant 1 : index
    %156 = vector.load %arg7[%c0_78, %c0_79, %c1_80] : memref<2x20x20xf32, #tpu.memory_space<vmem>>, vector<2x20x19xf32>
    %157 = tpu.concatenate %156, %156, %156, %156, %156, %156, %156, %156 in 2 : vector<2x20x19xf32>, vector<2x20x19xf32>, vector<2x20x19xf32>, vector<2x20x19xf32>, vector<2x20x19xf32>, vector<2x20x19xf32>, vector<2x20x19xf32>, vector<2x20x19xf32> -> vector<2x20x152xf32>
    %158 = vector.extract_strided_slice %157 {offsets = [0, 0, 0], sizes = [2, 19, 152], strides = [1, 1, 1]} : vector<2x20x152xf32> to vector<2x19x152xf32>
    %c5 = arith.constant 5 : index
    %c0_81 = arith.constant 0 : index
    %c0_82 = arith.constant 0 : index
    %159 = vector.load %arg3[%c5, %c0_81, %c0_82] : memref<16x1x152xf32, #tpu.memory_space<vmem>>, vector<1x1x152xf32>
    %160 = vector.shape_cast %159 : vector<1x1x152xf32> to vector<1x152xf32>
    %161 = vector.shape_cast %160 : vector<1x152xf32> to vector<1x1x152xf32>
    %162 = vector.broadcast %161 : vector<1x1x152xf32> to vector<2x19x152xf32>
    %163 = arith.mulf %158, %162 : vector<2x19x152xf32>
    %164 = arith.addf %155, %163 : vector<2x19x152xf32>
    %165 = vector.extract_strided_slice %157 {offsets = [0, 1, 0], sizes = [2, 19, 152], strides = [1, 1, 1]} : vector<2x20x152xf32> to vector<2x19x152xf32>
    %c7 = arith.constant 7 : index
    %c0_83 = arith.constant 0 : index
    %c0_84 = arith.constant 0 : index
    %166 = vector.load %arg3[%c7, %c0_83, %c0_84] : memref<16x1x152xf32, #tpu.memory_space<vmem>>, vector<1x1x152xf32>
    %167 = vector.shape_cast %166 : vector<1x1x152xf32> to vector<1x152xf32>
    %168 = vector.shape_cast %167 : vector<1x152xf32> to vector<1x1x152xf32>
    %169 = vector.broadcast %168 : vector<1x1x152xf32> to vector<2x19x152xf32>
    %170 = arith.mulf %165, %169 : vector<2x19x152xf32>
    %171 = arith.addf %164, %170 : vector<2x19x152xf32>
    %c0_85 = arith.constant 0 : index
    %c2_86 = arith.constant 2 : index
    %c0_87 = arith.constant 0 : index
    %c0_88 = arith.constant 0 : index
    %172 = vector.load %arg0[%c0_85, %c2_86, %c0_87, %c0_88] : memref<2x4x16x16xf32, #tpu.memory_space<vmem>>, vector<1x1x16x16xf32>
    %173 = vector.shape_cast %172 : vector<1x1x16x16xf32> to vector<16x16xf32>
    %c1_89 = arith.constant 1 : index
    %c2_90 = arith.constant 2 : index
    %c0_91 = arith.constant 0 : index
    %c0_92 = arith.constant 0 : index
    %174 = vector.load %arg0[%c1_89, %c2_90, %c0_91, %c0_92] : memref<2x4x16x16xf32, #tpu.memory_space<vmem>>, vector<1x1x16x16xf32>
    %175 = vector.shape_cast %174 : vector<1x1x16x16xf32> to vector<16x16xf32>
    %176 = vector.shape_cast %173 : vector<16x16xf32> to vector<1x16x16xf32>
    %cst_93 = arith.constant dense<0.000000e+00> : vector<1xf32>
    %177 = vector.multi_reduction <add>, %176, %cst_93 [1, 2] : vector<1x16x16xf32> to vector<1xf32>
    %178 = vector.shape_cast %177 : vector<1xf32> to vector<1x1x1xf32>
    %179 = vector.extract %178[0, 0, 0] : f32 from vector<1x1x1xf32>
    %cst_94 = arith.constant 0.000000e+00 : f32
    %180 = arith.addf %cst_94, %179 : f32
    %181 = vector.shape_cast %175 : vector<16x16xf32> to vector<1x16x16xf32>
    %cst_95 = arith.constant dense<0.000000e+00> : vector<1xf32>
    %182 = vector.multi_reduction <add>, %181, %cst_95 [1, 2] : vector<1x16x16xf32> to vector<1xf32>
    %183 = vector.shape_cast %182 : vector<1xf32> to vector<1x1x1xf32>
    %184 = vector.extract %183[0, 0, 0] : f32 from vector<1x1x1xf32>
    %185 = arith.addf %180, %184 : f32
    %cst_96 = arith.constant 0.001953125 : f32
    %186 = arith.mulf %185, %cst_96 : f32
    %187 = vector.broadcast %186 : f32 to vector<16x16xf32>
    %188 = arith.subf %173, %187 : vector<16x16xf32>
    %189 = vector.broadcast %186 : f32 to vector<16x16xf32>
    %190 = arith.subf %175, %189 : vector<16x16xf32>
    %191 = arith.mulf %188, %188 : vector<16x16xf32>
    %192 = vector.shape_cast %191 : vector<16x16xf32> to vector<1x16x16xf32>
    %cst_97 = arith.constant dense<0.000000e+00> : vector<1xf32>
    %193 = vector.multi_reduction <add>, %192, %cst_97 [1, 2] : vector<1x16x16xf32> to vector<1xf32>
    %194 = vector.shape_cast %193 : vector<1xf32> to vector<1x1x1xf32>
    %195 = vector.extract %194[0, 0, 0] : f32 from vector<1x1x1xf32>
    %cst_98 = arith.constant 0.000000e+00 : f32
    %196 = arith.addf %cst_98, %195 : f32
    %197 = arith.mulf %190, %190 : vector<16x16xf32>
    %198 = vector.shape_cast %197 : vector<16x16xf32> to vector<1x16x16xf32>
    %cst_99 = arith.constant dense<0.000000e+00> : vector<1xf32>
    %199 = vector.multi_reduction <add>, %198, %cst_99 [1, 2] : vector<1x16x16xf32> to vector<1xf32>
    %200 = vector.shape_cast %199 : vector<1xf32> to vector<1x1x1xf32>
    %201 = vector.extract %200[0, 0, 0] : f32 from vector<1x1x1xf32>
    %202 = arith.addf %196, %201 : f32
    %cst_100 = arith.constant 0.001953125 : f32
    %203 = arith.mulf %202, %cst_100 : f32
    %c2_101 = arith.constant 2 : index
    %204 = memref.load %arg1[%c2_101] : memref<4xf32, #tpu.memory_space<smem>>
    %cst_102 = arith.constant 9.99999974E-6 : f32
    %205 = arith.addf %203, %cst_102 : f32
    %206 = math.rsqrt %205 : f32
    %207 = arith.mulf %204, %206 : f32
    %c2_103 = arith.constant 2 : index
    %208 = memref.load %arg2[%c2_103] : memref<4xf32, #tpu.memory_space<smem>>
    %209 = vector.broadcast %207 : f32 to vector<16x16xf32>
    %210 = arith.mulf %188, %209 : vector<16x16xf32>
    %211 = vector.broadcast %208 : f32 to vector<16x16xf32>
    %212 = arith.addf %210, %211 : vector<16x16xf32>
    %c0_104 = arith.constant 0 : index
    %c2_105 = arith.constant 2 : index
    %c2_106 = arith.constant 2 : index
    %213 = vector.load %arg7[%c0_104, %c2_105, %c2_106] : memref<2x20x20xf32, #tpu.memory_space<vmem>>, vector<1x16x16xf32>
    %214 = vector.shape_cast %213 : vector<1x16x16xf32> to vector<16x16xf32>
    %215 = vector.shape_cast %212 : vector<16x16xf32> to vector<1x16x16xf32>
    tpu.vector_store %arg7[%c0_104, %c2_105, %c2_106], %215 {strides = array<i32>} : memref<2x20x20xf32, #tpu.memory_space<vmem>>, vector<1x16x16xf32>,
    %216 = vector.broadcast %207 : f32 to vector<16x16xf32>
    %217 = arith.mulf %190, %216 : vector<16x16xf32>
    %218 = vector.broadcast %208 : f32 to vector<16x16xf32>
    %219 = arith.addf %217, %218 : vector<16x16xf32>
    %c1_107 = arith.constant 1 : index
    %c2_108 = arith.constant 2 : index
    %c2_109 = arith.constant 2 : index
    %220 = vector.load %arg7[%c1_107, %c2_108, %c2_109] : memref<2x20x20xf32, #tpu.memory_space<vmem>>, vector<1x16x16xf32>
    %221 = vector.shape_cast %220 : vector<1x16x16xf32> to vector<16x16xf32>
    %222 = vector.shape_cast %219 : vector<16x16xf32> to vector<1x16x16xf32>
    tpu.vector_store %arg7[%c1_107, %c2_108, %c2_109], %222 {strides = array<i32>} : memref<2x20x20xf32, #tpu.memory_space<vmem>>, vector<1x16x16xf32>,
    %c0_110 = arith.constant 0 : index
    %c0_111 = arith.constant 0 : index
    %c0_112 = arith.constant 0 : index
    %223 = vector.load %arg7[%c0_110, %c0_111, %c0_112] : memref<2x20x20xf32, #tpu.memory_space<vmem>>, vector<2x20x19xf32>
    %224 = tpu.concatenate %223, %223, %223, %223, %223, %223, %223, %223 in 2 : vector<2x20x19xf32>, vector<2x20x19xf32>, vector<2x20x19xf32>, vector<2x20x19xf32>, vector<2x20x19xf32>, vector<2x20x19xf32>, vector<2x20x19xf32>, vector<2x20x19xf32> -> vector<2x20x152xf32>
    %225 = vector.extract_strided_slice %224 {offsets = [0, 0, 0], sizes = [2, 19, 152], strides = [1, 1, 1]} : vector<2x20x152xf32> to vector<2x19x152xf32>
    %c8 = arith.constant 8 : index
    %c0_113 = arith.constant 0 : index
    %c0_114 = arith.constant 0 : index
    %226 = vector.load %arg3[%c8, %c0_113, %c0_114] : memref<16x1x152xf32, #tpu.memory_space<vmem>>, vector<1x1x152xf32>
    %227 = vector.shape_cast %226 : vector<1x1x152xf32> to vector<1x152xf32>
    %228 = vector.shape_cast %227 : vector<1x152xf32> to vector<1x1x152xf32>
    %229 = vector.broadcast %228 : vector<1x1x152xf32> to vector<2x19x152xf32>
    %230 = arith.mulf %225, %229 : vector<2x19x152xf32>
    %231 = arith.addf %171, %230 : vector<2x19x152xf32>
    %232 = vector.extract_strided_slice %224 {offsets = [0, 1, 0], sizes = [2, 19, 152], strides = [1, 1, 1]} : vector<2x20x152xf32> to vector<2x19x152xf32>
    %c10 = arith.constant 10 : index
    %c0_115 = arith.constant 0 : index
    %c0_116 = arith.constant 0 : index
    %233 = vector.load %arg3[%c10, %c0_115, %c0_116] : memref<16x1x152xf32, #tpu.memory_space<vmem>>, vector<1x1x152xf32>
    %234 = vector.shape_cast %233 : vector<1x1x152xf32> to vector<1x152xf32>
    %235 = vector.shape_cast %234 : vector<1x152xf32> to vector<1x1x152xf32>
    %236 = vector.broadcast %235 : vector<1x1x152xf32> to vector<2x19x152xf32>
    %237 = arith.mulf %232, %236 : vector<2x19x152xf32>
    %238 = arith.addf %231, %237 : vector<2x19x152xf32>
    %c0_117 = arith.constant 0 : index
    %c0_118 = arith.constant 0 : index
    %c1_119 = arith.constant 1 : index
    %239 = vector.load %arg7[%c0_117, %c0_118, %c1_119] : memref<2x20x20xf32, #tpu.memory_space<vmem>>, vector<2x20x19xf32>
    %240 = tpu.concatenate %239, %239, %239, %239, %239, %239, %239, %239 in 2 : vector<2x20x19xf32>, vector<2x20x19xf32>, vector<2x20x19xf32>, vector<2x20x19xf32>, vector<2x20x19xf32>, vector<2x20x19xf32>, vector<2x20x19xf32>, vector<2x20x19xf32> -> vector<2x20x152xf32>
    %241 = vector.extract_strided_slice %240 {offsets = [0, 0, 0], sizes = [2, 19, 152], strides = [1, 1, 1]} : vector<2x20x152xf32> to vector<2x19x152xf32>
    %c9 = arith.constant 9 : index
    %c0_120 = arith.constant 0 : index
    %c0_121 = arith.constant 0 : index
    %242 = vector.load %arg3[%c9, %c0_120, %c0_121] : memref<16x1x152xf32, #tpu.memory_space<vmem>>, vector<1x1x152xf32>
    %243 = vector.shape_cast %242 : vector<1x1x152xf32> to vector<1x152xf32>
    %244 = vector.shape_cast %243 : vector<1x152xf32> to vector<1x1x152xf32>
    %245 = vector.broadcast %244 : vector<1x1x152xf32> to vector<2x19x152xf32>
    %246 = arith.mulf %241, %245 : vector<2x19x152xf32>
    %247 = arith.addf %238, %246 : vector<2x19x152xf32>
    %248 = vector.extract_strided_slice %240 {offsets = [0, 1, 0], sizes = [2, 19, 152], strides = [1, 1, 1]} : vector<2x20x152xf32> to vector<2x19x152xf32>
    %c11 = arith.constant 11 : index
    %c0_122 = arith.constant 0 : index
    %c0_123 = arith.constant 0 : index
    %249 = vector.load %arg3[%c11, %c0_122, %c0_123] : memref<16x1x152xf32, #tpu.memory_space<vmem>>, vector<1x1x152xf32>
    %250 = vector.shape_cast %249 : vector<1x1x152xf32> to vector<1x152xf32>
    %251 = vector.shape_cast %250 : vector<1x152xf32> to vector<1x1x152xf32>
    %252 = vector.broadcast %251 : vector<1x1x152xf32> to vector<2x19x152xf32>
    %253 = arith.mulf %248, %252 : vector<2x19x152xf32>
    %254 = arith.addf %247, %253 : vector<2x19x152xf32>
    %c0_124 = arith.constant 0 : index
    %c3_125 = arith.constant 3 : index
    %c0_126 = arith.constant 0 : index
    %c0_127 = arith.constant 0 : index
    %255 = vector.load %arg0[%c0_124, %c3_125, %c0_126, %c0_127] : memref<2x4x16x16xf32, #tpu.memory_space<vmem>>, vector<1x1x16x16xf32>
    %256 = vector.shape_cast %255 : vector<1x1x16x16xf32> to vector<16x16xf32>
    %c1_128 = arith.constant 1 : index
    %c3_129 = arith.constant 3 : index
    %c0_130 = arith.constant 0 : index
    %c0_131 = arith.constant 0 : index
    %257 = vector.load %arg0[%c1_128, %c3_129, %c0_130, %c0_131] : memref<2x4x16x16xf32, #tpu.memory_space<vmem>>, vector<1x1x16x16xf32>
    %258 = vector.shape_cast %257 : vector<1x1x16x16xf32> to vector<16x16xf32>
    %259 = vector.shape_cast %256 : vector<16x16xf32> to vector<1x16x16xf32>
    %cst_132 = arith.constant dense<0.000000e+00> : vector<1xf32>
    %260 = vector.multi_reduction <add>, %259, %cst_132 [1, 2] : vector<1x16x16xf32> to vector<1xf32>
    %261 = vector.shape_cast %260 : vector<1xf32> to vector<1x1x1xf32>
    %262 = vector.extract %261[0, 0, 0] : f32 from vector<1x1x1xf32>
    %cst_133 = arith.constant 0.000000e+00 : f32
    %263 = arith.addf %cst_133, %262 : f32
    %264 = vector.shape_cast %258 : vector<16x16xf32> to vector<1x16x16xf32>
    %cst_134 = arith.constant dense<0.000000e+00> : vector<1xf32>
    %265 = vector.multi_reduction <add>, %264, %cst_134 [1, 2] : vector<1x16x16xf32> to vector<1xf32>
    %266 = vector.shape_cast %265 : vector<1xf32> to vector<1x1x1xf32>
    %267 = vector.extract %266[0, 0, 0] : f32 from vector<1x1x1xf32>
    %268 = arith.addf %263, %267 : f32
    %cst_135 = arith.constant 0.001953125 : f32
    %269 = arith.mulf %268, %cst_135 : f32
    %270 = vector.broadcast %269 : f32 to vector<16x16xf32>
    %271 = arith.subf %256, %270 : vector<16x16xf32>
    %272 = vector.broadcast %269 : f32 to vector<16x16xf32>
    %273 = arith.subf %258, %272 : vector<16x16xf32>
    %274 = arith.mulf %271, %271 : vector<16x16xf32>
    %275 = vector.shape_cast %274 : vector<16x16xf32> to vector<1x16x16xf32>
    %cst_136 = arith.constant dense<0.000000e+00> : vector<1xf32>
    %276 = vector.multi_reduction <add>, %275, %cst_136 [1, 2] : vector<1x16x16xf32> to vector<1xf32>
    %277 = vector.shape_cast %276 : vector<1xf32> to vector<1x1x1xf32>
    %278 = vector.extract %277[0, 0, 0] : f32 from vector<1x1x1xf32>
    %cst_137 = arith.constant 0.000000e+00 : f32
    %279 = arith.addf %cst_137, %278 : f32
    %280 = arith.mulf %273, %273 : vector<16x16xf32>
    %281 = vector.shape_cast %280 : vector<16x16xf32> to vector<1x16x16xf32>
    %cst_138 = arith.constant dense<0.000000e+00> : vector<1xf32>
    %282 = vector.multi_reduction <add>, %281, %cst_138 [1, 2] : vector<1x16x16xf32> to vector<1xf32>
    %283 = vector.shape_cast %282 : vector<1xf32> to vector<1x1x1xf32>
    %284 = vector.extract %283[0, 0, 0] : f32 from vector<1x1x1xf32>
    %285 = arith.addf %279, %284 : f32
    %cst_139 = arith.constant 0.001953125 : f32
    %286 = arith.mulf %285, %cst_139 : f32
    %c3_140 = arith.constant 3 : index
    %287 = memref.load %arg1[%c3_140] : memref<4xf32, #tpu.memory_space<smem>>
    %cst_141 = arith.constant 9.99999974E-6 : f32
    %288 = arith.addf %286, %cst_141 : f32
    %289 = math.rsqrt %288 : f32
    %290 = arith.mulf %287, %289 : f32
    %c3_142 = arith.constant 3 : index
    %291 = memref.load %arg2[%c3_142] : memref<4xf32, #tpu.memory_space<smem>>
    %292 = vector.broadcast %290 : f32 to vector<16x16xf32>
    %293 = arith.mulf %271, %292 : vector<16x16xf32>
    %294 = vector.broadcast %291 : f32 to vector<16x16xf32>
    %295 = arith.addf %293, %294 : vector<16x16xf32>
    %c0_143 = arith.constant 0 : index
    %c2_144 = arith.constant 2 : index
    %c2_145 = arith.constant 2 : index
    %296 = vector.load %arg7[%c0_143, %c2_144, %c2_145] : memref<2x20x20xf32, #tpu.memory_space<vmem>>, vector<1x16x16xf32>
    %297 = vector.shape_cast %296 : vector<1x16x16xf32> to vector<16x16xf32>
    %298 = vector.shape_cast %295 : vector<16x16xf32> to vector<1x16x16xf32>
    tpu.vector_store %arg7[%c0_143, %c2_144, %c2_145], %298 {strides = array<i32>} : memref<2x20x20xf32, #tpu.memory_space<vmem>>, vector<1x16x16xf32>,
    %299 = vector.broadcast %290 : f32 to vector<16x16xf32>
    %300 = arith.mulf %273, %299 : vector<16x16xf32>
    %301 = vector.broadcast %291 : f32 to vector<16x16xf32>
    %302 = arith.addf %300, %301 : vector<16x16xf32>
    %c1_146 = arith.constant 1 : index
    %c2_147 = arith.constant 2 : index
    %c2_148 = arith.constant 2 : index
    %303 = vector.load %arg7[%c1_146, %c2_147, %c2_148] : memref<2x20x20xf32, #tpu.memory_space<vmem>>, vector<1x16x16xf32>
    %304 = vector.shape_cast %303 : vector<1x16x16xf32> to vector<16x16xf32>
    %305 = vector.shape_cast %302 : vector<16x16xf32> to vector<1x16x16xf32>
    tpu.vector_store %arg7[%c1_146, %c2_147, %c2_148], %305 {strides = array<i32>} : memref<2x20x20xf32, #tpu.memory_space<vmem>>, vector<1x16x16xf32>,
    %c0_149 = arith.constant 0 : index
    %c0_150 = arith.constant 0 : index
    %c0_151 = arith.constant 0 : index
    %306 = vector.load %arg7[%c0_149, %c0_150, %c0_151] : memref<2x20x20xf32, #tpu.memory_space<vmem>>, vector<2x20x19xf32>
    %307 = tpu.concatenate %306, %306, %306, %306, %306, %306, %306, %306 in 2 : vector<2x20x19xf32>, vector<2x20x19xf32>, vector<2x20x19xf32>, vector<2x20x19xf32>, vector<2x20x19xf32>, vector<2x20x19xf32>, vector<2x20x19xf32>, vector<2x20x19xf32> -> vector<2x20x152xf32>
    %308 = vector.extract_strided_slice %307 {offsets = [0, 0, 0], sizes = [2, 19, 152], strides = [1, 1, 1]} : vector<2x20x152xf32> to vector<2x19x152xf32>
    %c12 = arith.constant 12 : index
    %c0_152 = arith.constant 0 : index
    %c0_153 = arith.constant 0 : index
    %309 = vector.load %arg3[%c12, %c0_152, %c0_153] : memref<16x1x152xf32, #tpu.memory_space<vmem>>, vector<1x1x152xf32>
    %310 = vector.shape_cast %309 : vector<1x1x152xf32> to vector<1x152xf32>
    %311 = vector.shape_cast %310 : vector<1x152xf32> to vector<1x1x152xf32>
    %312 = vector.broadcast %311 : vector<1x1x152xf32> to vector<2x19x152xf32>
    %313 = arith.mulf %308, %312 : vector<2x19x152xf32>
    %314 = arith.addf %254, %313 : vector<2x19x152xf32>
    %315 = vector.extract_strided_slice %307 {offsets = [0, 1, 0], sizes = [2, 19, 152], strides = [1, 1, 1]} : vector<2x20x152xf32> to vector<2x19x152xf32>
    %c14 = arith.constant 14 : index
    %c0_154 = arith.constant 0 : index
    %c0_155 = arith.constant 0 : index
    %316 = vector.load %arg3[%c14, %c0_154, %c0_155] : memref<16x1x152xf32, #tpu.memory_space<vmem>>, vector<1x1x152xf32>
    %317 = vector.shape_cast %316 : vector<1x1x152xf32> to vector<1x152xf32>
    %318 = vector.shape_cast %317 : vector<1x152xf32> to vector<1x1x152xf32>
    %319 = vector.broadcast %318 : vector<1x1x152xf32> to vector<2x19x152xf32>
    %320 = arith.mulf %315, %319 : vector<2x19x152xf32>
    %321 = arith.addf %314, %320 : vector<2x19x152xf32>
    %c0_156 = arith.constant 0 : index
    %c0_157 = arith.constant 0 : index
    %c1_158 = arith.constant 1 : index
    %322 = vector.load %arg7[%c0_156, %c0_157, %c1_158] : memref<2x20x20xf32, #tpu.memory_space<vmem>>, vector<2x20x19xf32>
    %323 = tpu.concatenate %322, %322, %322, %322, %322, %322, %322, %322 in 2 : vector<2x20x19xf32>, vector<2x20x19xf32>, vector<2x20x19xf32>, vector<2x20x19xf32>, vector<2x20x19xf32>, vector<2x20x19xf32>, vector<2x20x19xf32>, vector<2x20x19xf32> -> vector<2x20x152xf32>
    %324 = vector.extract_strided_slice %323 {offsets = [0, 0, 0], sizes = [2, 19, 152], strides = [1, 1, 1]} : vector<2x20x152xf32> to vector<2x19x152xf32>
    %c13 = arith.constant 13 : index
    %c0_159 = arith.constant 0 : index
    %c0_160 = arith.constant 0 : index
    %325 = vector.load %arg3[%c13, %c0_159, %c0_160] : memref<16x1x152xf32, #tpu.memory_space<vmem>>, vector<1x1x152xf32>
    %326 = vector.shape_cast %325 : vector<1x1x152xf32> to vector<1x152xf32>
    %327 = vector.shape_cast %326 : vector<1x152xf32> to vector<1x1x152xf32>
    %328 = vector.broadcast %327 : vector<1x1x152xf32> to vector<2x19x152xf32>
    %329 = arith.mulf %324, %328 : vector<2x19x152xf32>
    %330 = arith.addf %321, %329 : vector<2x19x152xf32>
    %331 = vector.extract_strided_slice %323 {offsets = [0, 1, 0], sizes = [2, 19, 152], strides = [1, 1, 1]} : vector<2x20x152xf32> to vector<2x19x152xf32>
    %c15 = arith.constant 15 : index
    %c0_161 = arith.constant 0 : index
    %c0_162 = arith.constant 0 : index
    %332 = vector.load %arg3[%c15, %c0_161, %c0_162] : memref<16x1x152xf32, #tpu.memory_space<vmem>>, vector<1x1x152xf32>
    %333 = vector.shape_cast %332 : vector<1x1x152xf32> to vector<1x152xf32>
    %334 = vector.shape_cast %333 : vector<1x152xf32> to vector<1x1x152xf32>
    %335 = vector.broadcast %334 : vector<1x1x152xf32> to vector<2x19x152xf32>
    %336 = arith.mulf %331, %335 : vector<2x19x152xf32>
    %337 = arith.addf %330, %336 : vector<2x19x152xf32>
    %cst_163 = arith.constant 0.000000e+00 : f32
    %338 = vector.broadcast %cst_163 : f32 to vector<2x19x152xf32>
    %339 = arith.cmpf ogt, %337, %338 : vector<2x19x152xf32>
    %340 = vector.broadcast %0 : f32 to vector<2x19x152xf32>
    %341 = arith.mulf %340, %337 : vector<2x19x152xf32>
    %342 = arith.select %339, %337, %341 : vector<2x19x152xi1>, vector<2x19x152xf32>
    %c0_164 = arith.constant 0 : index
    %c0_165 = arith.constant 0 : index
    %c0_166 = arith.constant 0 : index
    %343 = vector.load %arg6[%c0_164, %c0_165, %c0_166] : memref<2x19x152xf32, #tpu.memory_space<vmem>>, vector<2x19x152xf32>
    tpu.vector_store %arg6[%c0_164, %c0_165, %c0_166], %342 {strides = array<i32>} : memref<2x19x152xf32, #tpu.memory_space<vmem>>, vector<2x19x152xf32>,
    return
  }
}

</mosaic_0001>

<llo_original>
// kernel: conv_res_forward.1
$region0: #{conv_res_forward.1}
  #allocation0 [shape = 'u32[]', space=smem, size = 0x4, offset = 0x4, fixed_abs, tag = 'smem constant byte address 0x4 - core index']
  #allocation1 [shape = 'u32[144,128]{1,0:T(1,128)}', space=vmem, size = 0x12000, scoped, tag = 'internal scratch']
  #allocation2 [shape = 'f32[2,20,20]{2,1,0:T(8,128)}', space=vmem, size = 0x6000, scoped, tag = 'scratch operand']
  #allocation3 [shape = 'f32[1]{0:T(128)S(6)}', space=smem, size = 0x200, scoped, tag = 'scoped memory for conv_res_forward.1']
  %s0 = inlined_call_operand.vmem [shape: f32[2,4,16,16], index: 0, kind: input, shape index: {}]
  %s1 = inlined_call_operand.vmem [shape: f32[4], index: 1, kind: input, shape index: {}]
  %s2 = inlined_call_operand.vmem [shape: f32[4], index: 2, kind: input, shape index: {}]
  %s3 = inlined_call_operand.vmem [shape: f32[16,1,152], index: 3, kind: input, shape index: {}]
  %s4 = inlined_call_operand.vmem [shape: f32[1,1,152], index: 4, kind: input, shape index: {}]
  %s5 = inlined_call_operand.<no memory space> [shape: f32[1], index: 5, kind: input, shape index: {}]
  %s6 = inlined_call_operand.vmem [shape: f32[2,19,152], index: 6, kind: output, shape index: {}]
  %s7 = sld [smem:[#allocation0]]
  $region42: #{conv_res_forward.1} parent=0
    _
  %s9 = ssub.s32 1, %s7
  %s10 = scalar_select 0, %s9, %s7
  %11 = sst [smem:[#allocation3]] %s5
  $region1: #{conv_res_forward.1} parent=0
    #allocation4 [shape = 'u8[512]{0}', space=smem, size = 0x200, scoped, tag = 'input window, operand 1, single buffered']
    #allocation5 [shape = 's32[1]{0}', space=sflag, size = 0x4, scoped, tag = 'scoped memory for conv_res_forward.1']
    #allocation6 [shape = 'u8[512]{0}', space=smem, size = 0x200, scoped, tag = 'input window, operand 2, single buffered']
    #allocation7 [shape = 's32[1]{0}', space=sflag, size = 0x4, scoped, tag = 'scoped memory for conv_res_forward.1']
    %12 = vsyncpa [#allocation5], 0
    %13 = vsyncpa [#allocation7], 0
    // Predicated region
    $region2: #{conv_res_forward.1} parent=1 // pred_check
      _
    $region3: #{conv_res_forward.1} parent=1 // pred_check_branch
      %15 = sbr.rel (0) target = $region5
    $region4: #{conv_res_forward.1} parent=1 // pred_region
      _
    $region5: #{conv_res_forward.1} parent=1 // pred_fallthru
      _
    // Predicated region
    $region6: #{conv_res_forward.1} parent=1 // pred_check
      _
    $region7: #{conv_res_forward.1} parent=1 // pred_check_branch
      %17 = sbr.rel (0) target = $region9
    $region8: #{conv_res_forward.1} parent=1 // pred_region
      %s19 = ssub.s32 16, 16
      %20 = vsyncadd [#allocation5], %s19
      %s22 = sshll.u32 %s1, 4
      %s23 = int_to_ptr.vmem [resolvable:$true] %s22
      %25 = dma.vmem_to_smem %s23, 16, [#allocation4], [#allocation5]
    $region9: #{conv_res_forward.1} parent=1 // pred_fallthru
      _
    // Predicated region
    $region10: #{conv_res_forward.1} parent=1 // pred_check
      _
    $region11: #{conv_res_forward.1} parent=1 // pred_check_branch
      %27 = sbr.rel (0) target = $region13
    $region12: #{conv_res_forward.1} parent=1 // pred_region
      %s29 = ssub.s32 16, 16
      %30 = vsyncadd [#allocation7], %s29
      %s32 = sshll.u32 %s2, 4
      %s33 = int_to_ptr.vmem [resolvable:$true] %s32
      %35 = dma.vmem_to_smem %s33, 16, [#allocation6], [#allocation7]
    $region13: #{conv_res_forward.1} parent=1 // pred_fallthru
      _
    // Predicated region
    $region14: #{conv_res_forward.1} parent=1 // pred_check
      _
    $region15: #{conv_res_forward.1} parent=1 // pred_check_branch
      %37 = sbr.rel (0) target = $region17
    $region16: #{conv_res_forward.1} parent=1 // pred_region
      _
    $region17: #{conv_res_forward.1} parent=1 // pred_fallthru
      _
    // Predicated region
    $region18: #{conv_res_forward.1} parent=1 // pred_check
      _
    $region19: #{conv_res_forward.1} parent=1 // pred_check_branch
      %39 = sbr.rel (0) target = $region21
    $region20: #{conv_res_forward.1} parent=1 // pred_region
      _
    $region21: #{conv_res_forward.1} parent=1 // pred_fallthru
      _
    // Predicated region
    $region22: #{conv_res_forward.1} parent=1 // pred_check
      _
    $region23: #{conv_res_forward.1} parent=1 // pred_check_branch
      %41 = sbr.rel (0) target = $region25
    $region24: #{conv_res_forward.1} parent=1 // pred_region
      _
    $region25: #{conv_res_forward.1} parent=1 // pred_fallthru
      _
    // Predicated region
    $region26: #{conv_res_forward.1} parent=1 // pred_check
      _
    $region27: #{conv_res_forward.1} parent=1 // pred_check_branch
      %43 = sbr.rel (0) target = $region29
    $region28: #{conv_res_forward.1} parent=1 // pred_region
      %44 = dma.done [#allocation5], 16
    $region29: #{conv_res_forward.1} parent=1 // pred_fallthru
      _
    // Predicated region
    $region30: #{conv_res_forward.1} parent=1 // pred_check
      _
    $region31: #{conv_res_forward.1} parent=1 // pred_check_branch
      %46 = sbr.rel (0) target = $region33
    $region32: #{conv_res_forward.1} parent=1 // pred_region
      %47 = dma.done [#allocation7], 16
    $region33: #{conv_res_forward.1} parent=1 // pred_fallthru
      _
    %48 = sfence
    %s49 = sld [smem:[#allocation3]]
    %vm50 = vcmask 162816
    %51 = vst.msk [vmem:[#allocation2] sm:$0xff] %vm50, 0.0
    %52 = vst.msk [vmem:[#allocation2 + $0x8] sm:$0xff] %vm50, 0.0
    %vm53 = vcmask 158720
    %54 = vst.msk [vmem:[#allocation2 + $0x10] sm:$0xf] %vm53, 0.0
    %55 = vst.msk [vmem:[#allocation2 + $0x18] sm:$0xff] %vm50, 0.0
    %56 = vst.msk [vmem:[#allocation2 + $0x20] sm:$0xff] %vm50, 0.0
    %57 = vst.msk [vmem:[#allocation2 + $0x28] sm:$0xf] %vm53, 0.0
    %v58 = vld [vmem:[%s4] sm:$0x3]
    %v60 = vlaneseq
    %v61 = vshrl.u32 %v60, 7
    %v62 = vsub.s32 0, %v61
    %v63 = vrot.slane %v58, %v62
    %v64 = vlaneseq
    %v65 = vshrl.u32 %v64, 7
    %v66 = vsub.s32 1, %v65
    %v67 = vrot.slane %v58, %v66
    %v70 = vld [vmem:[%s0] sm:$0xff]
    %v71 = vld [vmem:[%s0 + $0x8] sm:$0xff]
    %s72 = scalar_lea.vmem %s0, 64
    %v73 = vld [vmem:[%s72] sm:$0xff]
    %v74 = vld [vmem:[%s72 + $0x8] sm:$0xff]
    %vm75 = vcmask 130048
    %v76 = vsel %vm75, %v70, 0.0
    %v77 = vsel %vm75, %v71, 0.0
    %v78 = vadd.f32 %v76, %v77
    %79 = vadd.xlane.f32.xlu0 %v78
    %v80 = vpop.xlane.xlu0 %79
    %v81 = vrot.slane %v80, 4
    %v82 = vadd.f32 %v80, %v81
    %v83 = vrot.slane %v82, 2
    %v84 = vadd.f32 %v82, %v83
    %v85 = vrot.slane %v84, 1
    %v86 = vadd.f32 %v84, %v85
    %s87 = vtos %v86
    %s88 = sadd.f32 %s87, 0.0
    %v89 = vsel %vm75, %v73, 0.0
    %v90 = vsel %vm75, %v74, 0.0
    %v91 = vadd.f32 %v89, %v90
    %92 = vadd.xlane.f32.xlu0 %v91
    %v93 = vpop.xlane.xlu0 %92
    %v94 = vrot.slane %v93, 4
    %v95 = vadd.f32 %v93, %v94
    %v96 = vrot.slane %v95, 2
    %v97 = vadd.f32 %v95, %v96
    %v98 = vrot.slane %v97, 1
    %v99 = vadd.f32 %v97, %v98
    %s100 = vtos %v99
    %s101 = sadd.f32 %s88, %s100
    %s102 = smul.f32 %s101, 0.001953125
    %v103 = vstv %s102
    %v104 = vsub.f32 %v70, %v103
    %v105 = vsub.f32 %v71, %v103
    %v106 = vsub.f32 %v73, %v103
    %v107 = vsub.f32 %v74, %v103
    %v108 = vmul.f32 %v104, %v104
    %v109 = vmul.f32 %v105, %v105
    %v110 = vsel %vm75, %v108, 0.0
    %v111 = vsel %vm75, %v109, 0.0
    %v112 = vadd.f32 %v110, %v111
    %113 = vadd.xlane.f32.xlu0 %v112
    %v114 = vpop.xlane.xlu0 %113
    %v115 = vrot.slane %v114, 4
    %v116 = vadd.f32 %v114, %v115
    %v117 = vrot.slane %v116, 2
    %v118 = vadd.f32 %v116, %v117
    %v119 = vrot.slane %v118, 1
    %v120 = vadd.f32 %v118, %v119
    %s121 = vtos %v120
    %s122 = sadd.f32 %s121, 0.0
    %v123 = vmul.f32 %v106, %v106
    %v124 = vmul.f32 %v107, %v107
    %v125 = vsel %vm75, %v123, 0.0
    %v126 = vsel %vm75, %v124, 0.0
    %v127 = vadd.f32 %v125, %v126
    %128 = vadd.xlane.f32.xlu0 %v127
    %v129 = vpop.xlane.xlu0 %128
    %v130 = vrot.slane %v129, 4
    %v131 = vadd.f32 %v129, %v130
    %v132 = vrot.slane %v131, 2
    %v133 = vadd.f32 %v131, %v132
    %v134 = vrot.slane %v133, 1
    %v135 = vadd.f32 %v133, %v134
    %s136 = vtos %v135
    %s137 = sadd.f32 %s122, %s136
    %s138 = smul.f32 %s137, 0.001953125
    %s139 = sld [smem:[#allocation4]]
    %s140 = sadd.f32 %s138, 1e-05
    %v141 = vstv %s140
    %v142 = vrsqrt.pop %v141
    %s143 = vtos %v142
    %s144 = smul.f32 %s139, %s143
    %s145 = sld [smem:[#allocation6]]
    %v146 = vstv %s144
    %v147 = vmul.f32 %v104, %v146
    %v148 = vmul.f32 %v105, %v146
    %v149 = vstv %s145
    %v150 = vadd.f32 %v147, %v149
    %v151 = vadd.f32 %v148, %v149
    %154 = vrot.lane.b32.xlu0 %v150, 2
    %v155 = vpop.permute.xlu0 %154
    %156 = vrot.lane.b32.xlu0 %v151, 2
    %v157 = vpop.permute.xlu0 %156
    %vm160 = vcmask 146448
    %161 = vst.msk [vmem:[#allocation2 + $0x2] sm:$0xff] %vm160, %v155
    %162 = vst.msk [vmem:[#allocation2 + $0xa] sm:$0xff] %vm160, %v157
    %v163 = vmul.f32 %v106, %v146
    %v164 = vmul.f32 %v107, %v146
    %v165 = vadd.f32 %v163, %v149
    %v166 = vadd.f32 %v164, %v149
    %169 = vrot.lane.b32.xlu0 %v165, 2
    %v170 = vpop.permute.xlu0 %169
    %171 = vrot.lane.b32.xlu0 %v166, 2
    %v172 = vpop.permute.xlu0 %171
    %s175 = scalar_lea.vmem [#allocation2], 24
    %176 = vst.msk [vmem:[%s175 + $0x2] sm:$0xff] %vm160, %v170
    %177 = vst.msk [vmem:[%s175 + $0xa] sm:$0xff] %vm160, %v172
    %v178 = vld [vmem:[#allocation2] sm:$0xff]
    %v179 = vld [vmem:[#allocation2 + $0x8] sm:$0xff]
    %v180 = vld [vmem:[#allocation2 + $0x10] sm:$0xf]
    %v181 = vld [vmem:[#allocation2 + $0x18] sm:$0xff]
    %v182 = vld [vmem:[#allocation2 + $0x20] sm:$0xff]
    %v183 = vld [vmem:[#allocation2 + $0x28] sm:$0xf]
    %190 = vrot.lane.b32.xlu0 %v178, 19
    %v191 = vpop.permute.xlu0 %190
    %192 = vrot.lane.b32.xlu0 %v179, 19
    %v193 = vpop.permute.xlu0 %192
    %194 = vrot.lane.b32.xlu0 %v180, 19
    %v195 = vpop.permute.xlu0 %194
    %196 = vrot.lane.b32.xlu0 %v181, 19
    %v197 = vpop.permute.xlu0 %196
    %198 = vrot.lane.b32.xlu0 %v182, 19
    %v199 = vpop.permute.xlu0 %198
    %200 = vrot.lane.b32.xlu0 %v183, 19
    %v201 = vpop.permute.xlu0 %200
    %208 = vrot.lane.b32.xlu0 %v178, 38
    %v209 = vpop.permute.xlu0 %208
    %210 = vrot.lane.b32.xlu0 %v179, 38
    %v211 = vpop.permute.xlu0 %210
    %212 = vrot.lane.b32.xlu0 %v180, 38
    %v213 = vpop.permute.xlu0 %212
    %214 = vrot.lane.b32.xlu0 %v181, 38
    %v215 = vpop.permute.xlu0 %214
    %216 = vrot.lane.b32.xlu0 %v182, 38
    %v217 = vpop.permute.xlu0 %216
    %218 = vrot.lane.b32.xlu0 %v183, 38
    %v219 = vpop.permute.xlu0 %218
    %226 = vrot.lane.b32.xlu0 %v178, 57
    %v227 = vpop.permute.xlu0 %226
    %228 = vrot.lane.b32.xlu0 %v179, 57
    %v229 = vpop.permute.xlu0 %228
    %230 = vrot.lane.b32.xlu0 %v180, 57
    %v231 = vpop.permute.xlu0 %230
    %232 = vrot.lane.b32.xlu0 %v181, 57
    %v233 = vpop.permute.xlu0 %232
    %234 = vrot.lane.b32.xlu0 %v182, 57
    %v235 = vpop.permute.xlu0 %234
    %236 = vrot.lane.b32.xlu0 %v183, 57
    %v237 = vpop.permute.xlu0 %236
    %244 = vrot.lane.b32.xlu0 %v178, 76
    %v245 = vpop.permute.xlu0 %244
    %246 = vrot.lane.b32.xlu0 %v179, 76
    %v247 = vpop.permute.xlu0 %246
    %248 = vrot.lane.b32.xlu0 %v180, 76
    %v249 = vpop.permute.xlu0 %248
    %250 = vrot.lane.b32.xlu0 %v181, 76
    %v251 = vpop.permute.xlu0 %250
    %252 = vrot.lane.b32.xlu0 %v182, 76
    %v253 = vpop.permute.xlu0 %252
    %254 = vrot.lane.b32.xlu0 %v183, 76
    %v255 = vpop.permute.xlu0 %254
    %262 = vrot.lane.b32.xlu0 %v178, 95
    %v263 = vpop.permute.xlu0 %262
    %264 = vrot.lane.b32.xlu0 %v179, 95
    %v265 = vpop.permute.xlu0 %264
    %266 = vrot.lane.b32.xlu0 %v180, 95
    %v267 = vpop.permute.xlu0 %266
    %268 = vrot.lane.b32.xlu0 %v181, 95
    %v269 = vpop.permute.xlu0 %268
    %270 = vrot.lane.b32.xlu0 %v182, 95
    %v271 = vpop.permute.xlu0 %270
    %272 = vrot.lane.b32.xlu0 %v183, 95
    %v273 = vpop.permute.xlu0 %272
    %280 = vrot.lane.b32.xlu0 %v178, 114
    %v281 = vpop.permute.xlu0 %280
    %282 = vrot.lane.b32.xlu0 %v179, 114
    %v283 = vpop.permute.xlu0 %282
    %284 = vrot.lane.b32.xlu0 %v180, 114
    %v285 = vpop.permute.xlu0 %284
    %286 = vrot.lane.b32.xlu0 %v181, 114
    %v287 = vpop.permute.xlu0 %286
    %288 = vrot.lane.b32.xlu0 %v182, 114
    %v289 = vpop.permute.xlu0 %288
    %290 = vrot.lane.b32.xlu0 %v183, 114
    %v291 = vpop.permute.xlu0 %290
    %298 = vrot.lane.b32.xlu0 %v178, 5
    %v299 = vpop.permute.xlu0 %298
    %300 = vrot.lane.b32.xlu0 %v179, 5
    %v301 = vpop.permute.xlu0 %300
    %302 = vrot.lane.b32.xlu0 %v180, 5
    %v303 = vpop.permute.xlu0 %302
    %304 = vrot.lane.b32.xlu0 %v181, 5
    %v305 = vpop.permute.xlu0 %304
    %306 = vrot.lane.b32.xlu0 %v182, 5
    %v307 = vpop.permute.xlu0 %306
    %308 = vrot.lane.b32.xlu0 %v183, 5
    %v309 = vpop.permute.xlu0 %308
    %vm316 = vcmask 154624
    %v317 = vsel %vm316, %v178, %v191
    %v318 = vsel %vm316, %v179, %v193
    %v319 = vsel %vm316, %v180, %v195
    %v320 = vsel %vm316, %v181, %v197
    %v321 = vsel %vm316, %v182, %v199
    %v322 = vsel %vm316, %v183, %v201
    %vm323 = vcmask 310272
    %v324 = vsel %vm323, %v317, %v209
    %v325 = vsel %vm323, %v318, %v211
    %v326 = vsel %vm323, %v319, %v213
    %v327 = vsel %vm323, %v320, %v215
    %v328 = vsel %vm323, %v321, %v217
    %v329 = vsel %vm323, %v322, %v219
    %vm330 = vcmask 465920
    %v331 = vsel %vm330, %v324, %v227
    %v332 = vsel %vm330, %v325, %v229
    %v333 = vsel %vm330, %v326, %v231
    %v334 = vsel %vm330, %v327, %v233
    %v335 = vsel %vm330, %v328, %v235
    %v336 = vsel %vm330, %v329, %v237
    %vm337 = vcmask 621568
    %v338 = vsel %vm337, %v331, %v245
    %v339 = vsel %vm337, %v332, %v247
    %v340 = vsel %vm337, %v333, %v249
    %v341 = vsel %vm337, %v334, %v251
    %v342 = vsel %vm337, %v335, %v253
    %v343 = vsel %vm337, %v336, %v255
    %vm344 = vcmask 777216
    %v345 = vsel %vm344, %v338, %v263
    %v346 = vsel %vm344, %v339, %v265
    %v347 = vsel %vm344, %v340, %v267
    %v348 = vsel %vm344, %v341, %v269
    %v349 = vsel %vm344, %v342, %v271
    %v350 = vsel %vm344, %v343, %v273
    %vm351 = vcmask 932864
    %v352 = vsel %vm351, %v345, %v281
    %v353 = vsel %vm351, %v346, %v283
    %v354 = vsel %vm351, %v347, %v285
    %v355 = vsel %vm351, %v348, %v287
    %v356 = vsel %vm351, %v349, %v289
    %v357 = vsel %vm351, %v350, %v291
    %vm358 = vcmask 39936
    %v359 = vsel %vm358, %v281, %v299
    %v360 = vsel %vm358, %v283, %v301
    %v361 = vsel %vm358, %v285, %v303
    %v362 = vsel %vm358, %v287, %v305
    %v363 = vsel %vm358, %v289, %v307
    %v364 = vsel %vm358, %v291, %v309
    %v365 = vld [vmem:[%s3] sm:$0x3]
    %v367 = vlaneseq
    %v368 = vshrl.u32 %v367, 7
    %v369 = vsub.s32 0, %v368
    %v370 = vrot.slane %v365, %v369
    %v371 = vlaneseq
    %v372 = vshrl.u32 %v371, 7
    %v373 = vsub.s32 1, %v372
    %v374 = vrot.slane %v365, %v373
    %v377 = vmul.f32 %v352, %v370
    %v378 = vmul.f32 %v359, %v374
    %v379 = vmul.f32 %v353, %v370
    %v380 = vmul.f32 %v360, %v374
    %v381 = vmul.f32 %v354, %v370
    %v382 = vmul.f32 %v361, %v374
    %v383 = vmul.f32 %v355, %v370
    %v384 = vmul.f32 %v362, %v374
    %v385 = vmul.f32 %v356, %v370
    %v386 = vmul.f32 %v363, %v374
    %v387 = vmul.f32 %v357, %v370
    %v388 = vmul.f32 %v364, %v374
    %v389 = vadd.f32 %v63, %v377
    %v390 = vadd.f32 %v67, %v378
    %v391 = vadd.f32 %v63, %v379
    %v392 = vadd.f32 %v67, %v380
    %v393 = vadd.f32 %v63, %v381
    %v394 = vadd.f32 %v67, %v382
    %v395 = vadd.f32 %v63, %v383
    %v396 = vadd.f32 %v67, %v384
    %v397 = vadd.f32 %v63, %v385
    %v398 = vadd.f32 %v67, %v386
    %v399 = vadd.f32 %v63, %v387
    %v400 = vadd.f32 %v67, %v388
    %s401 = scalar_lea.vmem %s3, 4
    %v402 = vld [vmem:[%s401] sm:$0x3]
    %v404 = vlaneseq
    %v405 = vshrl.u32 %v404, 7
    %v406 = vsub.s32 0, %v405
    %v407 = vrot.slane %v402, %v406
    %v408 = vlaneseq
    %v409 = vshrl.u32 %v408, 7
    %v410 = vsub.s32 1, %v409
    %v411 = vrot.slane %v402, %v410
    %v414 = vmul.f32 %v352, %v407
    %v415 = vmul.f32 %v359, %v411
    %v416 = vmul.f32 %v353, %v407
    %v417 = vmul.f32 %v360, %v411
    %v418 = vmul.f32 %v354, %v407
    %v419 = vmul.f32 %v361, %v411
    %v420 = vmul.f32 %v355, %v407
    %v421 = vmul.f32 %v362, %v411
    %v422 = vmul.f32 %v356, %v407
    %v423 = vmul.f32 %v363, %v411
    %v424 = vmul.f32 %v357, %v407
    %v425 = vmul.f32 %v364, %v411
    %vm438 = vcmask 1046528
    %v439 = vrot.slane %v414, 1
    %v440 = vrot.slane %v416, 1
    %v441 = vsel %vm438, %v439, %v440
    %v442 = vrot.slane %v415, 1
    %v443 = vrot.slane %v417, 1
    %v444 = vsel %vm438, %v442, %v443
    %v445 = vrot.slane %v418, 1
    %v446 = vsel %vm438, %v440, %v445
    %v447 = vrot.slane %v419, 1
    %v448 = vsel %vm438, %v443, %v447
    %v449 = vrot.slane %v420, 1
    %v450 = vrot.slane %v422, 1
    %v451 = vsel %vm438, %v449, %v450
    %v452 = vrot.slane %v421, 1
    %v453 = vrot.slane %v423, 1
    %v454 = vsel %vm438, %v452, %v453
    %v455 = vrot.slane %v424, 1
    %v456 = vsel %vm438, %v450, %v455
    %v457 = vrot.slane %v425, 1
    %v458 = vsel %vm438, %v453, %v457
    %v471 = vadd.f32 %v389, %v441
    %v472 = vadd.f32 %v390, %v444
    %v473 = vadd.f32 %v391, %v446
    %v474 = vadd.f32 %v392, %v448
    %v475 = vadd.f32 %v393, %v445
    %v476 = vadd.f32 %v394, %v447
    %v477 = vadd.f32 %v395, %v451
    %v478 = vadd.f32 %v396, %v454
    %v479 = vadd.f32 %v397, %v456
    %v480 = vadd.f32 %v398, %v458
    %v481 = vadd.f32 %v399, %v455
    %v482 = vadd.f32 %v400, %v457
    %483 = vrot.lane.b32.xlu0 %v178, 127
    %v484 = vpop.permute.xlu0 %483
    %485 = vrot.lane.b32.xlu0 %v179, 127
    %v486 = vpop.permute.xlu0 %485
    %487 = vrot.lane.b32.xlu0 %v180, 127
    %v488 = vpop.permute.xlu0 %487
    %489 = vrot.lane.b32.xlu0 %v181, 127
    %v490 = vpop.permute.xlu0 %489
    %491 = vrot.lane.b32.xlu0 %v182, 127
    %v492 = vpop.permute.xlu0 %491
    %493 = vrot.lane.b32.xlu0 %v183, 127
    %v494 = vpop.permute.xlu0 %493
    %501 = vrot.lane.b32.xlu0 %v178, 18
    %v502 = vpop.permute.xlu0 %501
    %503 = vrot.lane.b32.xlu0 %v179, 18
    %v504 = vpop.permute.xlu0 %503
    %505 = vrot.lane.b32.xlu0 %v180, 18
    %v506 = vpop.permute.xlu0 %505
    %507 = vrot.lane.b32.xlu0 %v181, 18
    %v508 = vpop.permute.xlu0 %507
    %509 = vrot.lane.b32.xlu0 %v182, 18
    %v510 = vpop.permute.xlu0 %509
    %511 = vrot.lane.b32.xlu0 %v183, 18
    %v512 = vpop.permute.xlu0 %511
    %519 = vrot.lane.b32.xlu0 %v178, 37
    %v520 = vpop.permute.xlu0 %519
    %521 = vrot.lane.b32.xlu0 %v179, 37
    %v522 = vpop.permute.xlu0 %521
    %523 = vrot.lane.b32.xlu0 %v180, 37
    %v524 = vpop.permute.xlu0 %523
    %525 = vrot.lane.b32.xlu0 %v181, 37
    %v526 = vpop.permute.xlu0 %525
    %527 = vrot.lane.b32.xlu0 %v182, 37
    %v528 = vpop.permute.xlu0 %527
    %529 = vrot.lane.b32.xlu0 %v183, 37
    %v530 = vpop.permute.xlu0 %529
    %537 = vrot.lane.b32.xlu0 %v178, 56
    %v538 = vpop.permute.xlu0 %537
    %539 = vrot.lane.b32.xlu0 %v179, 56
    %v540 = vpop.permute.xlu0 %539
    %541 = vrot.lane.b32.xlu0 %v180, 56
    %v542 = vpop.permute.xlu0 %541
    %543 = vrot.lane.b32.xlu0 %v181, 56
    %v544 = vpop.permute.xlu0 %543
    %545 = vrot.lane.b32.xlu0 %v182, 56
    %v546 = vpop.permute.xlu0 %545
    %547 = vrot.lane.b32.xlu0 %v183, 56
    %v548 = vpop.permute.xlu0 %547
    %555 = vrot.lane.b32.xlu0 %v178, 75
    %v556 = vpop.permute.xlu0 %555
    %557 = vrot.lane.b32.xlu0 %v179, 75
    %v558 = vpop.permute.xlu0 %557
    %559 = vrot.lane.b32.xlu0 %v180, 75
    %v560 = vpop.permute.xlu0 %559
    %561 = vrot.lane.b32.xlu0 %v181, 75
    %v562 = vpop.permute.xlu0 %561
    %563 = vrot.lane.b32.xlu0 %v182, 75
    %v564 = vpop.permute.xlu0 %563
    %565 = vrot.lane.b32.xlu0 %v183, 75
    %v566 = vpop.permute.xlu0 %565
    %573 = vrot.lane.b32.xlu0 %v178, 94
    %v574 = vpop.permute.xlu0 %573
    %575 = vrot.lane.b32.xlu0 %v179, 94
    %v576 = vpop.permute.xlu0 %575
    %577 = vrot.lane.b32.xlu0 %v180, 94
    %v578 = vpop.permute.xlu0 %577
    %579 = vrot.lane.b32.xlu0 %v181, 94
    %v580 = vpop.permute.xlu0 %579
    %581 = vrot.lane.b32.xlu0 %v182, 94
    %v582 = vpop.permute.xlu0 %581
    %583 = vrot.lane.b32.xlu0 %v183, 94
    %v584 = vpop.permute.xlu0 %583
    %591 = vrot.lane.b32.xlu0 %v178, 113
    %v592 = vpop.permute.xlu0 %591
    %593 = vrot.lane.b32.xlu0 %v179, 113
    %v594 = vpop.permute.xlu0 %593
    %595 = vrot.lane.b32.xlu0 %v180, 113
    %v596 = vpop.permute.xlu0 %595
    %597 = vrot.lane.b32.xlu0 %v181, 113
    %v598 = vpop.permute.xlu0 %597
    %599 = vrot.lane.b32.xlu0 %v182, 113
    %v600 = vpop.permute.xlu0 %599
    %601 = vrot.lane.b32.xlu0 %v183, 113
    %v602 = vpop.permute.xlu0 %601
    %609 = vrot.lane.b32.xlu0 %v178, 4
    %v610 = vpop.permute.xlu0 %609
    %611 = vrot.lane.b32.xlu0 %v179, 4
    %v612 = vpop.permute.xlu0 %611
    %613 = vrot.lane.b32.xlu0 %v180, 4
    %v614 = vpop.permute.xlu0 %613
    %615 = vrot.lane.b32.xlu0 %v181, 4
    %v616 = vpop.permute.xlu0 %615
    %617 = vrot.lane.b32.xlu0 %v182, 4
    %v618 = vpop.permute.xlu0 %617
    %619 = vrot.lane.b32.xlu0 %v183, 4
    %v620 = vpop.permute.xlu0 %619
    %v627 = vsel %vm316, %v484, %v502
    %v628 = vsel %vm316, %v486, %v504
    %v629 = vsel %vm316, %v488, %v506
    %v630 = vsel %vm316, %v490, %v508
    %v631 = vsel %vm316, %v492, %v510
    %v632 = vsel %vm316, %v494, %v512
    %v633 = vsel %vm323, %v627, %v520
    %v634 = vsel %vm323, %v628, %v522
    %v635 = vsel %vm323, %v629, %v524
    %v636 = vsel %vm323, %v630, %v526
    %v637 = vsel %vm323, %v631, %v528
    %v638 = vsel %vm323, %v632, %v530
    %v639 = vsel %vm330, %v633, %v538
    %v640 = vsel %vm330, %v634, %v540
    %v641 = vsel %vm330, %v635, %v542
    %v642 = vsel %vm330, %v636, %v544
    %v643 = vsel %vm330, %v637, %v546
    %v644 = vsel %vm330, %v638, %v548
    %v645 = vsel %vm337, %v639, %v556
    %v646 = vsel %vm337, %v640, %v558
    %v647 = vsel %vm337, %v641, %v560
    %v648 = vsel %vm337, %v642, %v562
    %v649 = vsel %vm337, %v643, %v564
    %v650 = vsel %vm337, %v644, %v566
    %v651 = vsel %vm344, %v645, %v574
    %v652 = vsel %vm344, %v646, %v576
    %v653 = vsel %vm344, %v647, %v578
    %v654 = vsel %vm344, %v648, %v580
    %v655 = vsel %vm344, %v649, %v582
    %v656 = vsel %vm344, %v650, %v584
    %v657 = vsel %vm351, %v651, %v592
    %v658 = vsel %vm351, %v652, %v594
    %v659 = vsel %vm351, %v653, %v596
    %v660 = vsel %vm351, %v654, %v598
    %v661 = vsel %vm351, %v655, %v600
    %v662 = vsel %vm351, %v656, %v602
    %v663 = vsel %vm358, %v592, %v610
    %v664 = vsel %vm358, %v594, %v612
    %v665 = vsel %vm358, %v596, %v614
    %v666 = vsel %vm358, %v598, %v616
    %v667 = vsel %vm358, %v600, %v618
    %v668 = vsel %vm358, %v602, %v620
    %s669 = scalar_lea.vmem %s3, 2
    %v670 = vld [vmem:[%s669] sm:$0x3]
    %v672 = vlaneseq
    %v673 = vshrl.u32 %v672, 7
    %v674 = vsub.s32 0, %v673
    %v675 = vrot.slane %v670, %v674
    %v676 = vlaneseq
    %v677 = vshrl.u32 %v676, 7
    %v678 = vsub.s32 1, %v677
    %v679 = vrot.slane %v670, %v678
    %v682 = vmul.f32 %v657, %v675
    %v683 = vmul.f32 %v663, %v679
    %v684 = vmul.f32 %v658, %v675
    %v685 = vmul.f32 %v664, %v679
    %v686 = vmul.f32 %v659, %v675
    %v687 = vmul.f32 %v665, %v679
    %v688 = vmul.f32 %v660, %v675
    %v689 = vmul.f32 %v666, %v679
    %v690 = vmul.f32 %v661, %v675
    %v691 = vmul.f32 %v667, %v679
    %v692 = vmul.f32 %v662, %v675
    %v693 = vmul.f32 %v668, %v679
    %v694 = vadd.f32 %v471, %v682
    %v695 = vadd.f32 %v472, %v683
    %v696 = vadd.f32 %v473, %v684
    %v697 = vadd.f32 %v474, %v685
    %v698 = vadd.f32 %v475, %v686
    %v699 = vadd.f32 %v476, %v687
    %v700 = vadd.f32 %v477, %v688
    %v701 = vadd.f32 %v478, %v689
    %v702 = vadd.f32 %v479, %v690
    %v703 = vadd.f32 %v480, %v691
    %v704 = vadd.f32 %v481, %v692
    %v705 = vadd.f32 %v482, %v693
    %s706 = scalar_lea.vmem %s3, 6
    %v707 = vld [vmem:[%s706] sm:$0x3]
    %v709 = vlaneseq
    %v710 = vshrl.u32 %v709, 7
    %v711 = vsub.s32 0, %v710
    %v712 = vrot.slane %v707, %v711
    %v713 = vlaneseq
    %v714 = vshrl.u32 %v713, 7
    %v715 = vsub.s32 1, %v714
    %v716 = vrot.slane %v707, %v715
    %v719 = vmul.f32 %v657, %v712
    %v720 = vmul.f32 %v663, %v716
    %v721 = vmul.f32 %v658, %v712
    %v722 = vmul.f32 %v664, %v716
    %v723 = vmul.f32 %v659, %v712
    %v724 = vmul.f32 %v665, %v716
    %v725 = vmul.f32 %v660, %v712
    %v726 = vmul.f32 %v666, %v716
    %v727 = vmul.f32 %v661, %v712
    %v728 = vmul.f32 %v667, %v716
    %v729 = vmul.f32 %v662, %v712
    %v730 = vmul.f32 %v668, %v716
    %v743 = vrot.slane %v719, 1
    %v744 = vrot.slane %v721, 1
    %v745 = vsel %vm438, %v743, %v744
    %v746 = vrot.slane %v720, 1
    %v747 = vrot.slane %v722, 1
    %v748 = vsel %vm438, %v746, %v747
    %v749 = vrot.slane %v723, 1
    %v750 = vsel %vm438, %v744, %v749
    %v751 = vrot.slane %v724, 1
    %v752 = vsel %vm438, %v747, %v751
    %v753 = vrot.slane %v725, 1
    %v754 = vrot.slane %v727, 1
    %v755 = vsel %vm438, %v753, %v754
    %v756 = vrot.slane %v726, 1
    %v757 = vrot.slane %v728, 1
    %v758 = vsel %vm438, %v756, %v757
    %v759 = vrot.slane %v729, 1
    %v760 = vsel %vm438, %v754, %v759
    %v761 = vrot.slane %v730, 1
    %v762 = vsel %vm438, %v757, %v761
    %v775 = vadd.f32 %v694, %v745
    %v776 = vadd.f32 %v695, %v748
    %v777 = vadd.f32 %v696, %v750
    %v778 = vadd.f32 %v697, %v752
    %v779 = vadd.f32 %v698, %v749
    %v780 = vadd.f32 %v699, %v751
    %v781 = vadd.f32 %v700, %v755
    %v782 = vadd.f32 %v701, %v758
    %v783 = vadd.f32 %v702, %v760
    %v784 = vadd.f32 %v703, %v762
    %v785 = vadd.f32 %v704, %v759
    %v786 = vadd.f32 %v705, %v761
    %s787 = scalar_lea.vmem %s0, 16
    %v788 = vld [vmem:[%s787] sm:$0xff]
    %v789 = vld [vmem:[%s787 + $0x8] sm:$0xff]
    %s790 = scalar_lea.vmem %s0, 80
    %v791 = vld [vmem:[%s790] sm:$0xff]
    %v792 = vld [vmem:[%s790 + $0x8] sm:$0xff]
    %v793 = vsel %vm75, %v788, 0.0
    %v794 = vsel %vm75, %v789, 0.0
    %v795 = vadd.f32 %v793, %v794
    %796 = vadd.xlane.f32.xlu0 %v795
    %v797 = vpop.xlane.xlu0 %796
    %v798 = vrot.slane %v797, 4
    %v799 = vadd.f32 %v797, %v798
    %v800 = vrot.slane %v799, 2
    %v801 = vadd.f32 %v799, %v800
    %v802 = vrot.slane %v801, 1
    %v803 = vadd.f32 %v801, %v802
    %s804 = vtos %v803
    %s805 = sadd.f32 %s804, 0.0
    %v806 = vsel %vm75, %v791, 0.0
    %v807 = vsel %vm75, %v792, 0.0
    %v808 = vadd.f32 %v806, %v807
    %809 = vadd.xlane.f32.xlu0 %v808
    %v810 = vpop.xlane.xlu0 %809
    %v811 = vrot.slane %v810, 4
    %v812 = vadd.f32 %v810, %v811
    %v813 = vrot.slane %v812, 2
    %v814 = vadd.f32 %v812, %v813
    %v815 = vrot.slane %v814, 1
    %v816 = vadd.f32 %v814, %v815
    %s817 = vtos %v816
    %s818 = sadd.f32 %s805, %s817
    %s819 = smul.f32 %s818, 0.001953125
    %v820 = vstv %s819
    %v821 = vsub.f32 %v788, %v820
    %v822 = vsub.f32 %v789, %v820
    %v823 = vsub.f32 %v791, %v820
    %v824 = vsub.f32 %v792, %v820
    %v825 = vmul.f32 %v821, %v821
    %v826 = vmul.f32 %v822, %v822
    %v827 = vsel %vm75, %v825, 0.0
    %v828 = vsel %vm75, %v826, 0.0
    %v829 = vadd.f32 %v827, %v828
    %830 = vadd.xlane.f32.xlu0 %v829
    %v831 = vpop.xlane.xlu0 %830
    %v832 = vrot.slane %v831, 4
    %v833 = vadd.f32 %v831, %v832
    %v834 = vrot.slane %v833, 2
    %v835 = vadd.f32 %v833, %v834
    %v836 = vrot.slane %v835, 1
    %v837 = vadd.f32 %v835, %v836
    %s838 = vtos %v837
    %s839 = sadd.f32 %s838, 0.0
    %v840 = vmul.f32 %v823, %v823
    %v841 = vmul.f32 %v824, %v824
    %v842 = vsel %vm75, %v840, 0.0
    %v843 = vsel %vm75, %v841, 0.0
    %v844 = vadd.f32 %v842, %v843
    %845 = vadd.xlane.f32.xlu0 %v844
    %v846 = vpop.xlane.xlu0 %845
    %v847 = vrot.slane %v846, 4
    %v848 = vadd.f32 %v846, %v847
    %v849 = vrot.slane %v848, 2
    %v850 = vadd.f32 %v848, %v849
    %v851 = vrot.slane %v850, 1
    %v852 = vadd.f32 %v850, %v851
    %s853 = vtos %v852
    %s854 = sadd.f32 %s839, %s853
    %s855 = smul.f32 %s854, 0.001953125
    %s856 = sld [smem:[#allocation4 + $0x1]]
    %s857 = sadd.f32 %s855, 1e-05
    %v858 = vstv %s857
    %v859 = vrsqrt.pop %v858
    %s860 = vtos %v859
    %s861 = smul.f32 %s856, %s860
    %s862 = sld [smem:[#allocation6 + $0x1]]
    %v863 = vstv %s861
    %v864 = vmul.f32 %v821, %v863
    %v865 = vmul.f32 %v822, %v863
    %v866 = vstv %s862
    %v867 = vadd.f32 %v864, %v866
    %v868 = vadd.f32 %v865, %v866
    %871 = vrot.lane.b32.xlu0 %v867, 2
    %v872 = vpop.permute.xlu0 %871
    %873 = vrot.lane.b32.xlu0 %v868, 2
    %v874 = vpop.permute.xlu0 %873
    %877 = vst.msk [vmem:[#allocation2 + $0x2] sm:$0xff] %vm160, %v872
    %878 = vst.msk [vmem:[#allocation2 + $0xa] sm:$0xff] %vm160, %v874
    %v879 = vmul.f32 %v823, %v863
    %v880 = vmul.f32 %v824, %v863
    %v881 = vadd.f32 %v879, %v866
    %v882 = vadd.f32 %v880, %v866
    %885 = vrot.lane.b32.xlu0 %v881, 2
    %v886 = vpop.permute.xlu0 %885
    %887 = vrot.lane.b32.xlu0 %v882, 2
    %v888 = vpop.permute.xlu0 %887
    %891 = vst.msk [vmem:[%s175 + $0x2] sm:$0xff] %vm160, %v886
    %892 = vst.msk [vmem:[%s175 + $0xa] sm:$0xff] %vm160, %v888
    %v893 = vld [vmem:[#allocation2] sm:$0xff]
    %v894 = vld [vmem:[#allocation2 + $0x8] sm:$0xff]
    %v895 = vld [vmem:[#allocation2 + $0x10] sm:$0xf]
    %v896 = vld [vmem:[#allocation2 + $0x18] sm:$0xff]
    %v897 = vld [vmem:[#allocation2 + $0x20] sm:$0xff]
    %v898 = vld [vmem:[#allocation2 + $0x28] sm:$0xf]
    %905 = vrot.lane.b32.xlu0 %v893, 19
    %v906 = vpop.permute.xlu0 %905
    %907 = vrot.lane.b32.xlu0 %v894, 19
    %v908 = vpop.permute.xlu0 %907
    %909 = vrot.lane.b32.xlu0 %v895, 19
    %v910 = vpop.permute.xlu0 %909
    %911 = vrot.lane.b32.xlu0 %v896, 19
    %v912 = vpop.permute.xlu0 %911
    %913 = vrot.lane.b32.xlu0 %v897, 19
    %v914 = vpop.permute.xlu0 %913
    %915 = vrot.lane.b32.xlu0 %v898, 19
    %v916 = vpop.permute.xlu0 %915
    %923 = vrot.lane.b32.xlu0 %v893, 38
    %v924 = vpop.permute.xlu0 %923
    %925 = vrot.lane.b32.xlu0 %v894, 38
    %v926 = vpop.permute.xlu0 %925
    %927 = vrot.lane.b32.xlu0 %v895, 38
    %v928 = vpop.permute.xlu0 %927
    %929 = vrot.lane.b32.xlu0 %v896, 38
    %v930 = vpop.permute.xlu0 %929
    %931 = vrot.lane.b32.xlu0 %v897, 38
    %v932 = vpop.permute.xlu0 %931
    %933 = vrot.lane.b32.xlu0 %v898, 38
    %v934 = vpop.permute.xlu0 %933
    %941 = vrot.lane.b32.xlu0 %v893, 57
    %v942 = vpop.permute.xlu0 %941
    %943 = vrot.lane.b32.xlu0 %v894, 57
    %v944 = vpop.permute.xlu0 %943
    %945 = vrot.lane.b32.xlu0 %v895, 57
    %v946 = vpop.permute.xlu0 %945
    %947 = vrot.lane.b32.xlu0 %v896, 57
    %v948 = vpop.permute.xlu0 %947
    %949 = vrot.lane.b32.xlu0 %v897, 57
    %v950 = vpop.permute.xlu0 %949
    %951 = vrot.lane.b32.xlu0 %v898, 57
    %v952 = vpop.permute.xlu0 %951
    %959 = vrot.lane.b32.xlu0 %v893, 76
    %v960 = vpop.permute.xlu0 %959
    %961 = vrot.lane.b32.xlu0 %v894, 76
    %v962 = vpop.permute.xlu0 %961
    %963 = vrot.lane.b32.xlu0 %v895, 76
    %v964 = vpop.permute.xlu0 %963
    %965 = vrot.lane.b32.xlu0 %v896, 76
    %v966 = vpop.permute.xlu0 %965
    %967 = vrot.lane.b32.xlu0 %v897, 76
    %v968 = vpop.permute.xlu0 %967
    %969 = vrot.lane.b32.xlu0 %v898, 76
    %v970 = vpop.permute.xlu0 %969
    %977 = vrot.lane.b32.xlu0 %v893, 95
    %v978 = vpop.permute.xlu0 %977
    %979 = vrot.lane.b32.xlu0 %v894, 95
    %v980 = vpop.permute.xlu0 %979
    %981 = vrot.lane.b32.xlu0 %v895, 95
    %v982 = vpop.permute.xlu0 %981
    %983 = vrot.lane.b32.xlu0 %v896, 95
    %v984 = vpop.permute.xlu0 %983
    %985 = vrot.lane.b32.xlu0 %v897, 95
    %v986 = vpop.permute.xlu0 %985
    %987 = vrot.lane.b32.xlu0 %v898, 95
    %v988 = vpop.permute.xlu0 %987
    %995 = vrot.lane.b32.xlu0 %v893, 114
    %v996 = vpop.permute.xlu0 %995
    %997 = vrot.lane.b32.xlu0 %v894, 114
    %v998 = vpop.permute.xlu0 %997
    %999 = vrot.lane.b32.xlu0 %v895, 114
    %v1000 = vpop.permute.xlu0 %999
    %1001 = vrot.lane.b32.xlu0 %v896, 114
    %v1002 = vpop.permute.xlu0 %1001
    %1003 = vrot.lane.b32.xlu0 %v897, 114
    %v1004 = vpop.permute.xlu0 %1003
    %1005 = vrot.lane.b32.xlu0 %v898, 114
    %v1006 = vpop.permute.xlu0 %1005
    %1013 = vrot.lane.b32.xlu0 %v893, 5
    %v1014 = vpop.permute.xlu0 %1013
    %1015 = vrot.lane.b32.xlu0 %v894, 5
    %v1016 = vpop.permute.xlu0 %1015
    %1017 = vrot.lane.b32.xlu0 %v895, 5
    %v1018 = vpop.permute.xlu0 %1017
    %1019 = vrot.lane.b32.xlu0 %v896, 5
    %v1020 = vpop.permute.xlu0 %1019
    %1021 = vrot.lane.b32.xlu0 %v897, 5
    %v1022 = vpop.permute.xlu0 %1021
    %1023 = vrot.lane.b32.xlu0 %v898, 5
    %v1024 = vpop.permute.xlu0 %1023
    %v1031 = vsel %vm316, %v893, %v906
    %v1032 = vsel %vm316, %v894, %v908
    %v1033 = vsel %vm316, %v895, %v910
    %v1034 = vsel %vm316, %v896, %v912
    %v1035 = vsel %vm316, %v897, %v914
    %v1036 = vsel %vm316, %v898, %v916
    %v1037 = vsel %vm323, %v1031, %v924
    %v1038 = vsel %vm323, %v1032, %v926
    %v1039 = vsel %vm323, %v1033, %v928
    %v1040 = vsel %vm323, %v1034, %v930
    %v1041 = vsel %vm323, %v1035, %v932
    %v1042 = vsel %vm323, %v1036, %v934
    %v1043 = vsel %vm330, %v1037, %v942
    %v1044 = vsel %vm330, %v1038, %v944
    %v1045 = vsel %vm330, %v1039, %v946
    %v1046 = vsel %vm330, %v1040, %v948
    %v1047 = vsel %vm330, %v1041, %v950
    %v1048 = vsel %vm330, %v1042, %v952
    %v1049 = vsel %vm337, %v1043, %v960
    %v1050 = vsel %vm337, %v1044, %v962
    %v1051 = vsel %vm337, %v1045, %v964
    %v1052 = vsel %vm337, %v1046, %v966
    %v1053 = vsel %vm337, %v1047, %v968
    %v1054 = vsel %vm337, %v1048, %v970
    %v1055 = vsel %vm344, %v1049, %v978
    %v1056 = vsel %vm344, %v1050, %v980
    %v1057 = vsel %vm344, %v1051, %v982
    %v1058 = vsel %vm344, %v1052, %v984
    %v1059 = vsel %vm344, %v1053, %v986
    %v1060 = vsel %vm344, %v1054, %v988
    %v1061 = vsel %vm351, %v1055, %v996
    %v1062 = vsel %vm351, %v1056, %v998
    %v1063 = vsel %vm351, %v1057, %v1000
    %v1064 = vsel %vm351, %v1058, %v1002
    %v1065 = vsel %vm351, %v1059, %v1004
    %v1066 = vsel %vm351, %v1060, %v1006
    %v1067 = vsel %vm358, %v996, %v1014
    %v1068 = vsel %vm358, %v998, %v1016
    %v1069 = vsel %vm358, %v1000, %v1018
    %v1070 = vsel %vm358, %v1002, %v1020
    %v1071 = vsel %vm358, %v1004, %v1022
    %v1072 = vsel %vm358, %v1006, %v1024
    %s1073 = scalar_lea.vmem %s3, 8
    %v1074 = vld [vmem:[%s1073] sm:$0x3]
    %v1076 = vlaneseq
    %v1077 = vshrl.u32 %v1076, 7
    %v1078 = vsub.s32 0, %v1077
    %v1079 = vrot.slane %v1074, %v1078
    %v1080 = vlaneseq
    %v1081 = vshrl.u32 %v1080, 7
    %v1082 = vsub.s32 1, %v1081
    %v1083 = vrot.slane %v1074, %v1082
    %v1086 = vmul.f32 %v1061, %v1079
    %v1087 = vmul.f32 %v1067, %v1083
    %v1088 = vmul.f32 %v1062, %v1079
    %v1089 = vmul.f32 %v1068, %v1083
    %v1090 = vmul.f32 %v1063, %v1079
    %v1091 = vmul.f32 %v1069, %v1083
    %v1092 = vmul.f32 %v1064, %v1079
    %v1093 = vmul.f32 %v1070, %v1083
    %v1094 = vmul.f32 %v1065, %v1079
    %v1095 = vmul.f32 %v1071, %v1083
    %v1096 = vmul.f32 %v1066, %v1079
    %v1097 = vmul.f32 %v1072, %v1083
    %v1098 = vadd.f32 %v775, %v1086
    %v1099 = vadd.f32 %v776, %v1087
    %v1100 = vadd.f32 %v777, %v1088
    %v1101 = vadd.f32 %v778, %v1089
    %v1102 = vadd.f32 %v779, %v1090
    %v1103 = vadd.f32 %v780, %v1091
    %v1104 = vadd.f32 %v781, %v1092
    %v1105 = vadd.f32 %v782, %v1093
    %v1106 = vadd.f32 %v783, %v1094
    %v1107 = vadd.f32 %v784, %v1095
    %v1108 = vadd.f32 %v785, %v1096
    %v1109 = vadd.f32 %v786, %v1097
    %s1110 = scalar_lea.vmem %s3, 12
    %v1111 = vld [vmem:[%s1110] sm:$0x3]
    %v1113 = vlaneseq
    %v1114 = vshrl.u32 %v1113, 7
    %v1115 = vsub.s32 0, %v1114
    %v1116 = vrot.slane %v1111, %v1115
    %v1117 = vlaneseq
    %v1118 = vshrl.u32 %v1117, 7
    %v1119 = vsub.s32 1, %v1118
    %v1120 = vrot.slane %v1111, %v1119
    %v1123 = vmul.f32 %v1061, %v1116
    %v1124 = vmul.f32 %v1067, %v1120
    %v1125 = vmul.f32 %v1062, %v1116
    %v1126 = vmul.f32 %v1068, %v1120
    %v1127 = vmul.f32 %v1063, %v1116
    %v1128 = vmul.f32 %v1069, %v1120
    %v1129 = vmul.f32 %v1064, %v1116
    %v1130 = vmul.f32 %v1070, %v1120
    %v1131 = vmul.f32 %v1065, %v1116
    %v1132 = vmul.f32 %v1071, %v1120
    %v1133 = vmul.f32 %v1066, %v1116
    %v1134 = vmul.f32 %v1072, %v1120
    %v1147 = vrot.slane %v1123, 1
    %v1148 = vrot.slane %v1125, 1
    %v1149 = vsel %vm438, %v1147, %v1148
    %v1150 = vrot.slane %v1124, 1
    %v1151 = vrot.slane %v1126, 1
    %v1152 = vsel %vm438, %v1150, %v1151
    %v1153 = vrot.slane %v1127, 1
    %v1154 = vsel %vm438, %v1148, %v1153
    %v1155 = vrot.slane %v1128, 1
    %v1156 = vsel %vm438, %v1151, %v1155
    %v1157 = vrot.slane %v1129, 1
    %v1158 = vrot.slane %v1131, 1
    %v1159 = vsel %vm438, %v1157, %v1158
    %v1160 = vrot.slane %v1130, 1
    %v1161 = vrot.slane %v1132, 1
    %v1162 = vsel %vm438, %v1160, %v1161
    %v1163 = vrot.slane %v1133, 1
    %v1164 = vsel %vm438, %v1158, %v1163
    %v1165 = vrot.slane %v1134, 1
    %v1166 = vsel %vm438, %v1161, %v1165
    %v1179 = vadd.f32 %v1098, %v1149
    %v1180 = vadd.f32 %v1099, %v1152
    %v1181 = vadd.f32 %v1100, %v1154
    %v1182 = vadd.f32 %v1101, %v1156
    %v1183 = vadd.f32 %v1102, %v1153
    %v1184 = vadd.f32 %v1103, %v1155
    %v1185 = vadd.f32 %v1104, %v1159
    %v1186 = vadd.f32 %v1105, %v1162
    %v1187 = vadd.f32 %v1106, %v1164
    %v1188 = vadd.f32 %v1107, %v1166
    %v1189 = vadd.f32 %v1108, %v1163
    %v1190 = vadd.f32 %v1109, %v1165
    %1191 = vrot.lane.b32.xlu0 %v893, 127
    %v1192 = vpop.permute.xlu0 %1191
    %1193 = vrot.lane.b32.xlu0 %v894, 127
    %v1194 = vpop.permute.xlu0 %1193
    %1195 = vrot.lane.b32.xlu0 %v895, 127
    %v1196 = vpop.permute.xlu0 %1195
    %1197 = vrot.lane.b32.xlu0 %v896, 127
    %v1198 = vpop.permute.xlu0 %1197
    %1199 = vrot.lane.b32.xlu0 %v897, 127
    %v1200 = vpop.permute.xlu0 %1199
    %1201 = vrot.lane.b32.xlu0 %v898, 127
    %v1202 = vpop.permute.xlu0 %1201
    %1209 = vrot.lane.b32.xlu0 %v893, 18
    %v1210 = vpop.permute.xlu0 %1209
    %1211 = vrot.lane.b32.xlu0 %v894, 18
    %v1212 = vpop.permute.xlu0 %1211
    %1213 = vrot.lane.b32.xlu0 %v895, 18
    %v1214 = vpop.permute.xlu0 %1213
    %1215 = vrot.lane.b32.xlu0 %v896, 18
    %v1216 = vpop.permute.xlu0 %1215
    %1217 = vrot.lane.b32.xlu0 %v897, 18
    %v1218 = vpop.permute.xlu0 %1217
    %1219 = vrot.lane.b32.xlu0 %v898, 18
    %v1220 = vpop.permute.xlu0 %1219
    %1227 = vrot.lane.b32.xlu0 %v893, 37
    %v1228 = vpop.permute.xlu0 %1227
    %1229 = vrot.lane.b32.xlu0 %v894, 37
    %v1230 = vpop.permute.xlu0 %1229
    %1231 = vrot.lane.b32.xlu0 %v895, 37
    %v1232 = vpop.permute.xlu0 %1231
    %1233 = vrot.lane.b32.xlu0 %v896, 37
    %v1234 = vpop.permute.xlu0 %1233
    %1235 = vrot.lane.b32.xlu0 %v897, 37
    %v1236 = vpop.permute.xlu0 %1235
    %1237 = vrot.lane.b32.xlu0 %v898, 37
    %v1238 = vpop.permute.xlu0 %1237
    %1245 = vrot.lane.b32.xlu0 %v893, 56
    %v1246 = vpop.permute.xlu0 %1245
    %1247 = vrot.lane.b32.xlu0 %v894, 56
    %v1248 = vpop.permute.xlu0 %1247
    %1249 = vrot.lane.b32.xlu0 %v895, 56
    %v1250 = vpop.permute.xlu0 %1249
    %1251 = vrot.lane.b32.xlu0 %v896, 56
    %v1252 = vpop.permute.xlu0 %1251
    %1253 = vrot.lane.b32.xlu0 %v897, 56
    %v1254 = vpop.permute.xlu0 %1253
    %1255 = vrot.lane.b32.xlu0 %v898, 56
    %v1256 = vpop.permute.xlu0 %1255
    %1263 = vrot.lane.b32.xlu0 %v893, 75
    %v1264 = vpop.permute.xlu0 %1263
    %1265 = vrot.lane.b32.xlu0 %v894, 75
    %v1266 = vpop.permute.xlu0 %1265
    %1267 = vrot.lane.b32.xlu0 %v895, 75
    %v1268 = vpop.permute.xlu0 %1267
    %1269 = vrot.lane.b32.xlu0 %v896, 75
    %v1270 = vpop.permute.xlu0 %1269
    %1271 = vrot.lane.b32.xlu0 %v897, 75
    %v1272 = vpop.permute.xlu0 %1271
    %1273 = vrot.lane.b32.xlu0 %v898, 75
    %v1274 = vpop.permute.xlu0 %1273
    %1281 = vrot.lane.b32.xlu0 %v893, 94
    %v1282 = vpop.permute.xlu0 %1281
    %1283 = vrot.lane.b32.xlu0 %v894, 94
    %v1284 = vpop.permute.xlu0 %1283
    %1285 = vrot.lane.b32.xlu0 %v895, 94
    %v1286 = vpop.permute.xlu0 %1285
    %1287 = vrot.lane.b32.xlu0 %v896, 94
    %v1288 = vpop.permute.xlu0 %1287
    %1289 = vrot.lane.b32.xlu0 %v897, 94
    %v1290 = vpop.permute.xlu0 %1289
    %1291 = vrot.lane.b32.xlu0 %v898, 94
    %v1292 = vpop.permute.xlu0 %1291
    %1299 = vrot.lane.b32.xlu0 %v893, 113
    %v1300 = vpop.permute.xlu0 %1299
    %1301 = vrot.lane.b32.xlu0 %v894, 113
    %v1302 = vpop.permute.xlu0 %1301
    %1303 = vrot.lane.b32.xlu0 %v895, 113
    %v1304 = vpop.permute.xlu0 %1303
    %1305 = vrot.lane.b32.xlu0 %v896, 113
    %v1306 = vpop.permute.xlu0 %1305
    %1307 = vrot.lane.b32.xlu0 %v897, 113
    %v1308 = vpop.permute.xlu0 %1307
    %1309 = vrot.lane.b32.xlu0 %v898, 113
    %v1310 = vpop.permute.xlu0 %1309
    %1317 = vrot.lane.b32.xlu0 %v893, 4
    %v1318 = vpop.permute.xlu0 %1317
    %1319 = vrot.lane.b32.xlu0 %v894, 4
    %v1320 = vpop.permute.xlu0 %1319
    %1321 = vrot.lane.b32.xlu0 %v895, 4
    %v1322 = vpop.permute.xlu0 %1321
    %1323 = vrot.lane.b32.xlu0 %v896, 4
    %v1324 = vpop.permute.xlu0 %1323
    %1325 = vrot.lane.b32.xlu0 %v897, 4
    %v1326 = vpop.permute.xlu0 %1325
    %1327 = vrot.lane.b32.xlu0 %v898, 4
    %v1328 = vpop.permute.xlu0 %1327
    %v1335 = vsel %vm316, %v1192, %v1210
    %v1336 = vsel %vm316, %v1194, %v1212
    %v1337 = vsel %vm316, %v1196, %v1214
    %v1338 = vsel %vm316, %v1198, %v1216
    %v1339 = vsel %vm316, %v1200, %v1218
    %v1340 = vsel %vm316, %v1202, %v1220
    %v1341 = vsel %vm323, %v1335, %v1228
    %v1342 = vsel %vm323, %v1336, %v1230
    %v1343 = vsel %vm323, %v1337, %v1232
    %v1344 = vsel %vm323, %v1338, %v1234
    %v1345 = vsel %vm323, %v1339, %v1236
    %v1346 = vsel %vm323, %v1340, %v1238
    %v1347 = vsel %vm330, %v1341, %v1246
    %v1348 = vsel %vm330, %v1342, %v1248
    %v1349 = vsel %vm330, %v1343, %v1250
    %v1350 = vsel %vm330, %v1344, %v1252
    %v1351 = vsel %vm330, %v1345, %v1254
    %v1352 = vsel %vm330, %v1346, %v1256
    %v1353 = vsel %vm337, %v1347, %v1264
    %v1354 = vsel %vm337, %v1348, %v1266
    %v1355 = vsel %vm337, %v1349, %v1268
    %v1356 = vsel %vm337, %v1350, %v1270
    %v1357 = vsel %vm337, %v1351, %v1272
    %v1358 = vsel %vm337, %v1352, %v1274
    %v1359 = vsel %vm344, %v1353, %v1282
    %v1360 = vsel %vm344, %v1354, %v1284
    %v1361 = vsel %vm344, %v1355, %v1286
    %v1362 = vsel %vm344, %v1356, %v1288
    %v1363 = vsel %vm344, %v1357, %v1290
    %v1364 = vsel %vm344, %v1358, %v1292
    %v1365 = vsel %vm351, %v1359, %v1300
    %v1366 = vsel %vm351, %v1360, %v1302
    %v1367 = vsel %vm351, %v1361, %v1304
    %v1368 = vsel %vm351, %v1362, %v1306
    %v1369 = vsel %vm351, %v1363, %v1308
    %v1370 = vsel %vm351, %v1364, %v1310
    %v1371 = vsel %vm358, %v1300, %v1318
    %v1372 = vsel %vm358, %v1302, %v1320
    %v1373 = vsel %vm358, %v1304, %v1322
    %v1374 = vsel %vm358, %v1306, %v1324
    %v1375 = vsel %vm358, %v1308, %v1326
    %v1376 = vsel %vm358, %v1310, %v1328
    %s1377 = scalar_lea.vmem %s3, 10
    %v1378 = vld [vmem:[%s1377] sm:$0x3]
    %v1380 = vlaneseq
    %v1381 = vshrl.u32 %v1380, 7
    %v1382 = vsub.s32 0, %v1381
    %v1383 = vrot.slane %v1378, %v1382
    %v1384 = vlaneseq
    %v1385 = vshrl.u32 %v1384, 7
    %v1386 = vsub.s32 1, %v1385
    %v1387 = vrot.slane %v1378, %v1386
    %v1390 = vmul.f32 %v1365, %v1383
    %v1391 = vmul.f32 %v1371, %v1387
    %v1392 = vmul.f32 %v1366, %v1383
    %v1393 = vmul.f32 %v1372, %v1387
    %v1394 = vmul.f32 %v1367, %v1383
    %v1395 = vmul.f32 %v1373, %v1387
    %v1396 = vmul.f32 %v1368, %v1383
    %v1397 = vmul.f32 %v1374, %v1387
    %v1398 = vmul.f32 %v1369, %v1383
    %v1399 = vmul.f32 %v1375, %v1387
    %v1400 = vmul.f32 %v1370, %v1383
    %v1401 = vmul.f32 %v1376, %v1387
    %v1402 = vadd.f32 %v1179, %v1390
    %v1403 = vadd.f32 %v1180, %v1391
    %v1404 = vadd.f32 %v1181, %v1392
    %v1405 = vadd.f32 %v1182, %v1393
    %v1406 = vadd.f32 %v1183, %v1394
    %v1407 = vadd.f32 %v1184, %v1395
    %v1408 = vadd.f32 %v1185, %v1396
    %v1409 = vadd.f32 %v1186, %v1397
    %v1410 = vadd.f32 %v1187, %v1398
    %v1411 = vadd.f32 %v1188, %v1399
    %v1412 = vadd.f32 %v1189, %v1400
    %v1413 = vadd.f32 %v1190, %v1401
    %s1414 = scalar_lea.vmem %s3, 14
    %v1415 = vld [vmem:[%s1414] sm:$0x3]
    %v1417 = vlaneseq
    %v1418 = vshrl.u32 %v1417, 7
    %v1419 = vsub.s32 0, %v1418
    %v1420 = vrot.slane %v1415, %v1419
    %v1421 = vlaneseq
    %v1422 = vshrl.u32 %v1421, 7
    %v1423 = vsub.s32 1, %v1422
    %v1424 = vrot.slane %v1415, %v1423
    %v1427 = vmul.f32 %v1365, %v1420
    %v1428 = vmul.f32 %v1371, %v1424
    %v1429 = vmul.f32 %v1366, %v1420
    %v1430 = vmul.f32 %v1372, %v1424
    %v1431 = vmul.f32 %v1367, %v1420
    %v1432 = vmul.f32 %v1373, %v1424
    %v1433 = vmul.f32 %v1368, %v1420
    %v1434 = vmul.f32 %v1374, %v1424
    %v1435 = vmul.f32 %v1369, %v1420
    %v1436 = vmul.f32 %v1375, %v1424
    %v1437 = vmul.f32 %v1370, %v1420
    %v1438 = vmul.f32 %v1376, %v1424
    %v1451 = vrot.slane %v1427, 1
    %v1452 = vrot.slane %v1429, 1
    %v1453 = vsel %vm438, %v1451, %v1452
    %v1454 = vrot.slane %v1428, 1
    %v1455 = vrot.slane %v1430, 1
    %v1456 = vsel %vm438, %v1454, %v1455
    %v1457 = vrot.slane %v1431, 1
    %v1458 = vsel %vm438, %v1452, %v1457
    %v1459 = vrot.slane %v1432, 1
    %v1460 = vsel %vm438, %v1455, %v1459
    %v1461 = vrot.slane %v1433, 1
    %v1462 = vrot.slane %v1435, 1
    %v1463 = vsel %vm438, %v1461, %v1462
    %v1464 = vrot.slane %v1434, 1
    %v1465 = vrot.slane %v1436, 1
    %v1466 = vsel %vm438, %v1464, %v1465
    %v1467 = vrot.slane %v1437, 1
    %v1468 = vsel %vm438, %v1462, %v1467
    %v1469 = vrot.slane %v1438, 1
    %v1470 = vsel %vm438, %v1465, %v1469
    %v1483 = vadd.f32 %v1402, %v1453
    %v1484 = vadd.f32 %v1403, %v1456
    %v1485 = vadd.f32 %v1404, %v1458
    %v1486 = vadd.f32 %v1405, %v1460
    %v1487 = vadd.f32 %v1406, %v1457
    %v1488 = vadd.f32 %v1407, %v1459
    %v1489 = vadd.f32 %v1408, %v1463
    %v1490 = vadd.f32 %v1409, %v1466
    %v1491 = vadd.f32 %v1410, %v1468
    %v1492 = vadd.f32 %v1411, %v1470
    %v1493 = vadd.f32 %v1412, %v1467
    %v1494 = vadd.f32 %v1413, %v1469
    %s1495 = scalar_lea.vmem %s0, 32
    %v1496 = vld [vmem:[%s1495] sm:$0xff]
    %v1497 = vld [vmem:[%s1495 + $0x8] sm:$0xff]
    %s1498 = scalar_lea.vmem %s0, 96
    %v1499 = vld [vmem:[%s1498] sm:$0xff]
    %v1500 = vld [vmem:[%s1498 + $0x8] sm:$0xff]
    %v1501 = vsel %vm75, %v1496, 0.0
    %v1502 = vsel %vm75, %v1497, 0.0
    %v1503 = vadd.f32 %v1501, %v1502
    %1504 = vadd.xlane.f32.xlu0 %v1503
    %v1505 = vpop.xlane.xlu0 %1504
    %v1506 = vrot.slane %v1505, 4
    %v1507 = vadd.f32 %v1505, %v1506
    %v1508 = vrot.slane %v1507, 2
    %v1509 = vadd.f32 %v1507, %v1508
    %v1510 = vrot.slane %v1509, 1
    %v1511 = vadd.f32 %v1509, %v1510
    %s1512 = vtos %v1511
    %s1513 = sadd.f32 %s1512, 0.0
    %v1514 = vsel %vm75, %v1499, 0.0
    %v1515 = vsel %vm75, %v1500, 0.0
    %v1516 = vadd.f32 %v1514, %v1515
    %1517 = vadd.xlane.f32.xlu0 %v1516
    %v1518 = vpop.xlane.xlu0 %1517
    %v1519 = vrot.slane %v1518, 4
    %v1520 = vadd.f32 %v1518, %v1519
    %v1521 = vrot.slane %v1520, 2
    %v1522 = vadd.f32 %v1520, %v1521
    %v1523 = vrot.slane %v1522, 1
    %v1524 = vadd.f32 %v1522, %v1523
    %s1525 = vtos %v1524
    %s1526 = sadd.f32 %s1513, %s1525
    %s1527 = smul.f32 %s1526, 0.001953125
    %v1528 = vstv %s1527
    %v1529 = vsub.f32 %v1496, %v1528
    %v1530 = vsub.f32 %v1497, %v1528
    %v1531 = vsub.f32 %v1499, %v1528
    %v1532 = vsub.f32 %v1500, %v1528
    %v1533 = vmul.f32 %v1529, %v1529
    %v1534 = vmul.f32 %v1530, %v1530
    %v1535 = vsel %vm75, %v1533, 0.0
    %v1536 = vsel %vm75, %v1534, 0.0
    %v1537 = vadd.f32 %v1535, %v1536
    %1538 = vadd.xlane.f32.xlu0 %v1537
    %v1539 = vpop.xlane.xlu0 %1538
    %v1540 = vrot.slane %v1539, 4
    %v1541 = vadd.f32 %v1539, %v1540
    %v1542 = vrot.slane %v1541, 2
    %v1543 = vadd.f32 %v1541, %v1542
    %v1544 = vrot.slane %v1543, 1
    %v1545 = vadd.f32 %v1543, %v1544
    %s1546 = vtos %v1545
    %s1547 = sadd.f32 %s1546, 0.0
    %v1548 = vmul.f32 %v1531, %v1531
    %v1549 = vmul.f32 %v1532, %v1532
    %v1550 = vsel %vm75, %v1548, 0.0
    %v1551 = vsel %vm75, %v1549, 0.0
    %v1552 = vadd.f32 %v1550, %v1551
    %1553 = vadd.xlane.f32.xlu0 %v1552
    %v1554 = vpop.xlane.xlu0 %1553
    %v1555 = vrot.slane %v1554, 4
    %v1556 = vadd.f32 %v1554, %v1555
    %v1557 = vrot.slane %v1556, 2
    %v1558 = vadd.f32 %v1556, %v1557
    %v1559 = vrot.slane %v1558, 1
    %v1560 = vadd.f32 %v1558, %v1559
    %s1561 = vtos %v1560
    %s1562 = sadd.f32 %s1547, %s1561
    %s1563 = smul.f32 %s1562, 0.001953125
    %s1564 = sld [smem:[#allocation4 + $0x2]]
    %s1565 = sadd.f32 %s1563, 1e-05
    %v1566 = vstv %s1565
    %v1567 = vrsqrt.pop %v1566
    %s1568 = vtos %v1567
    %s1569 = smul.f32 %s1564, %s1568
    %s1570 = sld [smem:[#allocation6 + $0x2]]
    %v1571 = vstv %s1569
    %v1572 = vmul.f32 %v1529, %v1571
    %v1573 = vmul.f32 %v1530, %v1571
    %v1574 = vstv %s1570
    %v1575 = vadd.f32 %v1572, %v1574
    %v1576 = vadd.f32 %v1573, %v1574
    %1579 = vrot.lane.b32.xlu0 %v1575, 2
    %v1580 = vpop.permute.xlu0 %1579
    %1581 = vrot.lane.b32.xlu0 %v1576, 2
    %v1582 = vpop.permute.xlu0 %1581
    %1585 = vst.msk [vmem:[#allocation2 + $0x2] sm:$0xff] %vm160, %v1580
    %1586 = vst.msk [vmem:[#allocation2 + $0xa] sm:$0xff] %vm160, %v1582
    %v1587 = vmul.f32 %v1531, %v1571
    %v1588 = vmul.f32 %v1532, %v1571
    %v1589 = vadd.f32 %v1587, %v1574
    %v1590 = vadd.f32 %v1588, %v1574
    %1593 = vrot.lane.b32.xlu0 %v1589, 2
    %v1594 = vpop.permute.xlu0 %1593
    %1595 = vrot.lane.b32.xlu0 %v1590, 2
    %v1596 = vpop.permute.xlu0 %1595
    %1599 = vst.msk [vmem:[%s175 + $0x2] sm:$0xff] %vm160, %v1594
    %1600 = vst.msk [vmem:[%s175 + $0xa] sm:$0xff] %vm160, %v1596
    %v1601 = vld [vmem:[#allocation2] sm:$0xff]
    %v1602 = vld [vmem:[#allocation2 + $0x8] sm:$0xff]
    %v1603 = vld [vmem:[#allocation2 + $0x10] sm:$0xf]
    %v1604 = vld [vmem:[#allocation2 + $0x18] sm:$0xff]
    %v1605 = vld [vmem:[#allocation2 + $0x20] sm:$0xff]
    %v1606 = vld [vmem:[#allocation2 + $0x28] sm:$0xf]
    %1613 = vrot.lane.b32.xlu0 %v1601, 19
    %v1614 = vpop.permute.xlu0 %1613
    %1615 = vrot.lane.b32.xlu0 %v1602, 19
    %v1616 = vpop.permute.xlu0 %1615
    %1617 = vrot.lane.b32.xlu0 %v1603, 19
    %v1618 = vpop.permute.xlu0 %1617
    %1619 = vrot.lane.b32.xlu0 %v1604, 19
    %v1620 = vpop.permute.xlu0 %1619
    %1621 = vrot.lane.b32.xlu0 %v1605, 19
    %v1622 = vpop.permute.xlu0 %1621
    %1623 = vrot.lane.b32.xlu0 %v1606, 19
    %v1624 = vpop.permute.xlu0 %1623
    %1631 = vrot.lane.b32.xlu0 %v1601, 38
    %v1632 = vpop.permute.xlu0 %1631
    %1633 = vrot.lane.b32.xlu0 %v1602, 38
    %v1634 = vpop.permute.xlu0 %1633
    %1635 = vrot.lane.b32.xlu0 %v1603, 38
    %v1636 = vpop.permute.xlu0 %1635
    %1637 = vrot.lane.b32.xlu0 %v1604, 38
    %v1638 = vpop.permute.xlu0 %1637
    %1639 = vrot.lane.b32.xlu0 %v1605, 38
    %v1640 = vpop.permute.xlu0 %1639
    %1641 = vrot.lane.b32.xlu0 %v1606, 38
    %v1642 = vpop.permute.xlu0 %1641
    %1649 = vrot.lane.b32.xlu0 %v1601, 57
    %v1650 = vpop.permute.xlu0 %1649
    %1651 = vrot.lane.b32.xlu0 %v1602, 57
    %v1652 = vpop.permute.xlu0 %1651
    %1653 = vrot.lane.b32.xlu0 %v1603, 57
    %v1654 = vpop.permute.xlu0 %1653
    %1655 = vrot.lane.b32.xlu0 %v1604, 57
    %v1656 = vpop.permute.xlu0 %1655
    %1657 = vrot.lane.b32.xlu0 %v1605, 57
    %v1658 = vpop.permute.xlu0 %1657
    %1659 = vrot.lane.b32.xlu0 %v1606, 57
    %v1660 = vpop.permute.xlu0 %1659
    %1667 = vrot.lane.b32.xlu0 %v1601, 76
    %v1668 = vpop.permute.xlu0 %1667
    %1669 = vrot.lane.b32.xlu0 %v1602, 76
    %v1670 = vpop.permute.xlu0 %1669
    %1671 = vrot.lane.b32.xlu0 %v1603, 76
    %v1672 = vpop.permute.xlu0 %1671
    %1673 = vrot.lane.b32.xlu0 %v1604, 76
    %v1674 = vpop.permute.xlu0 %1673
    %1675 = vrot.lane.b32.xlu0 %v1605, 76
    %v1676 = vpop.permute.xlu0 %1675
    %1677 = vrot.lane.b32.xlu0 %v1606, 76
    %v1678 = vpop.permute.xlu0 %1677
    %1685 = vrot.lane.b32.xlu0 %v1601, 95
    %v1686 = vpop.permute.xlu0 %1685
    %1687 = vrot.lane.b32.xlu0 %v1602, 95
    %v1688 = vpop.permute.xlu0 %1687
    %1689 = vrot.lane.b32.xlu0 %v1603, 95
    %v1690 = vpop.permute.xlu0 %1689
    %1691 = vrot.lane.b32.xlu0 %v1604, 95
    %v1692 = vpop.permute.xlu0 %1691
    %1693 = vrot.lane.b32.xlu0 %v1605, 95
    %v1694 = vpop.permute.xlu0 %1693
    %1695 = vrot.lane.b32.xlu0 %v1606, 95
    %v1696 = vpop.permute.xlu0 %1695
    %1703 = vrot.lane.b32.xlu0 %v1601, 114
    %v1704 = vpop.permute.xlu0 %1703
    %1705 = vrot.lane.b32.xlu0 %v1602, 114
    %v1706 = vpop.permute.xlu0 %1705
    %1707 = vrot.lane.b32.xlu0 %v1603, 114
    %v1708 = vpop.permute.xlu0 %1707
    %1709 = vrot.lane.b32.xlu0 %v1604, 114
    %v1710 = vpop.permute.xlu0 %1709
    %1711 = vrot.lane.b32.xlu0 %v1605, 114
    %v1712 = vpop.permute.xlu0 %1711
    %1713 = vrot.lane.b32.xlu0 %v1606, 114
    %v1714 = vpop.permute.xlu0 %1713
    %1721 = vrot.lane.b32.xlu0 %v1601, 5
    %v1722 = vpop.permute.xlu0 %1721
    %1723 = vrot.lane.b32.xlu0 %v1602, 5
    %v1724 = vpop.permute.xlu0 %1723
    %1725 = vrot.lane.b32.xlu0 %v1603, 5
    %v1726 = vpop.permute.xlu0 %1725
    %1727 = vrot.lane.b32.xlu0 %v1604, 5
    %v1728 = vpop.permute.xlu0 %1727
    %1729 = vrot.lane.b32.xlu0 %v1605, 5
    %v1730 = vpop.permute.xlu0 %1729
    %1731 = vrot.lane.b32.xlu0 %v1606, 5
    %v1732 = vpop.permute.xlu0 %1731
    %v1739 = vsel %vm316, %v1601, %v1614
    %v1740 = vsel %vm316, %v1602, %v1616
    %v1741 = vsel %vm316, %v1603, %v1618
    %v1742 = vsel %vm316, %v1604, %v1620
    %v1743 = vsel %vm316, %v1605, %v1622
    %v1744 = vsel %vm316, %v1606, %v1624
    %v1745 = vsel %vm323, %v1739, %v1632
    %v1746 = vsel %vm323, %v1740, %v1634
    %v1747 = vsel %vm323, %v1741, %v1636
    %v1748 = vsel %vm323, %v1742, %v1638
    %v1749 = vsel %vm323, %v1743, %v1640
    %v1750 = vsel %vm323, %v1744, %v1642
    %v1751 = vsel %vm330, %v1745, %v1650
    %v1752 = vsel %vm330, %v1746, %v1652
    %v1753 = vsel %vm330, %v1747, %v1654
    %v1754 = vsel %vm330, %v1748, %v1656
    %v1755 = vsel %vm330, %v1749, %v1658
    %v1756 = vsel %vm330, %v1750, %v1660
    %v1757 = vsel %vm337, %v1751, %v1668
    %v1758 = vsel %vm337, %v1752, %v1670
    %v1759 = vsel %vm337, %v1753, %v1672
    %v1760 = vsel %vm337, %v1754, %v1674
    %v1761 = vsel %vm337, %v1755, %v1676
    %v1762 = vsel %vm337, %v1756, %v1678
    %v1763 = vsel %vm344, %v1757, %v1686
    %v1764 = vsel %vm344, %v1758, %v1688
    %v1765 = vsel %vm344, %v1759, %v1690
    %v1766 = vsel %vm344, %v1760, %v1692
    %v1767 = vsel %vm344, %v1761, %v1694
    %v1768 = vsel %vm344, %v1762, %v1696
    %v1769 = vsel %vm351, %v1763, %v1704
    %v1770 = vsel %vm351, %v1764, %v1706
    %v1771 = vsel %vm351, %v1765, %v1708
    %v1772 = vsel %vm351, %v1766, %v1710
    %v1773 = vsel %vm351, %v1767, %v1712
    %v1774 = vsel %vm351, %v1768, %v1714
    %v1775 = vsel %vm358, %v1704, %v1722
    %v1776 = vsel %vm358, %v1706, %v1724
    %v1777 = vsel %vm358, %v1708, %v1726
    %v1778 = vsel %vm358, %v1710, %v1728
    %v1779 = vsel %vm358, %v1712, %v1730
    %v1780 = vsel %vm358, %v1714, %v1732
    %s1781 = scalar_lea.vmem %s3, 16
    %v1782 = vld [vmem:[%s1781] sm:$0x3]
    %v1784 = vlaneseq
    %v1785 = vshrl.u32 %v1784, 7
    %v1786 = vsub.s32 0, %v1785
    %v1787 = vrot.slane %v1782, %v1786
    %v1788 = vlaneseq
    %v1789 = vshrl.u32 %v1788, 7
    %v1790 = vsub.s32 1, %v1789
    %v1791 = vrot.slane %v1782, %v1790
    %v1794 = vmul.f32 %v1769, %v1787
    %v1795 = vmul.f32 %v1775, %v1791
    %v1796 = vmul.f32 %v1770, %v1787
    %v1797 = vmul.f32 %v1776, %v1791
    %v1798 = vmul.f32 %v1771, %v1787
    %v1799 = vmul.f32 %v1777, %v1791
    %v1800 = vmul.f32 %v1772, %v1787
    %v1801 = vmul.f32 %v1778, %v1791
    %v1802 = vmul.f32 %v1773, %v1787
    %v1803 = vmul.f32 %v1779, %v1791
    %v1804 = vmul.f32 %v1774, %v1787
    %v1805 = vmul.f32 %v1780, %v1791
    %v1806 = vadd.f32 %v1483, %v1794
    %v1807 = vadd.f32 %v1484, %v1795
    %v1808 = vadd.f32 %v1485, %v1796
    %v1809 = vadd.f32 %v1486, %v1797
    %v1810 = vadd.f32 %v1487, %v1798
    %v1811 = vadd.f32 %v1488, %v1799
    %v1812 = vadd.f32 %v1489, %v1800
    %v1813 = vadd.f32 %v1490, %v1801
    %v1814 = vadd.f32 %v1491, %v1802
    %v1815 = vadd.f32 %v1492, %v1803
    %v1816 = vadd.f32 %v1493, %v1804
    %v1817 = vadd.f32 %v1494, %v1805
    %s1818 = scalar_lea.vmem %s3, 20
    %v1819 = vld [vmem:[%s1818] sm:$0x3]
    %v1821 = vlaneseq
    %v1822 = vshrl.u32 %v1821, 7
    %v1823 = vsub.s32 0, %v1822
    %v1824 = vrot.slane %v1819, %v1823
    %v1825 = vlaneseq
    %v1826 = vshrl.u32 %v1825, 7
    %v1827 = vsub.s32 1, %v1826
    %v1828 = vrot.slane %v1819, %v1827
    %v1831 = vmul.f32 %v1769, %v1824
    %v1832 = vmul.f32 %v1775, %v1828
    %v1833 = vmul.f32 %v1770, %v1824
    %v1834 = vmul.f32 %v1776, %v1828
    %v1835 = vmul.f32 %v1771, %v1824
    %v1836 = vmul.f32 %v1777, %v1828
    %v1837 = vmul.f32 %v1772, %v1824
    %v1838 = vmul.f32 %v1778, %v1828
    %v1839 = vmul.f32 %v1773, %v1824
    %v1840 = vmul.f32 %v1779, %v1828
    %v1841 = vmul.f32 %v1774, %v1824
    %v1842 = vmul.f32 %v1780, %v1828
    %v1855 = vrot.slane %v1831, 1
    %v1856 = vrot.slane %v1833, 1
    %v1857 = vsel %vm438, %v1855, %v1856
    %v1858 = vrot.slane %v1832, 1
    %v1859 = vrot.slane %v1834, 1
    %v1860 = vsel %vm438, %v1858, %v1859
    %v1861 = vrot.slane %v1835, 1
    %v1862 = vsel %vm438, %v1856, %v1861
    %v1863 = vrot.slane %v1836, 1
    %v1864 = vsel %vm438, %v1859, %v1863
    %v1865 = vrot.slane %v1837, 1
    %v1866 = vrot.slane %v1839, 1
    %v1867 = vsel %vm438, %v1865, %v1866
    %v1868 = vrot.slane %v1838, 1
    %v1869 = vrot.slane %v1840, 1
    %v1870 = vsel %vm438, %v1868, %v1869
    %v1871 = vrot.slane %v1841, 1
    %v1872 = vsel %vm438, %v1866, %v1871
    %v1873 = vrot.slane %v1842, 1
    %v1874 = vsel %vm438, %v1869, %v1873
    %v1887 = vadd.f32 %v1806, %v1857
    %v1888 = vadd.f32 %v1807, %v1860
    %v1889 = vadd.f32 %v1808, %v1862
    %v1890 = vadd.f32 %v1809, %v1864
    %v1891 = vadd.f32 %v1810, %v1861
    %v1892 = vadd.f32 %v1811, %v1863
    %v1893 = vadd.f32 %v1812, %v1867
    %v1894 = vadd.f32 %v1813, %v1870
    %v1895 = vadd.f32 %v1814, %v1872
    %v1896 = vadd.f32 %v1815, %v1874
    %v1897 = vadd.f32 %v1816, %v1871
    %v1898 = vadd.f32 %v1817, %v1873
    %1899 = vrot.lane.b32.xlu0 %v1601, 127
    %v1900 = vpop.permute.xlu0 %1899
    %1901 = vrot.lane.b32.xlu0 %v1602, 127
    %v1902 = vpop.permute.xlu0 %1901
    %1903 = vrot.lane.b32.xlu0 %v1603, 127
    %v1904 = vpop.permute.xlu0 %1903
    %1905 = vrot.lane.b32.xlu0 %v1604, 127
    %v1906 = vpop.permute.xlu0 %1905
    %1907 = vrot.lane.b32.xlu0 %v1605, 127
    %v1908 = vpop.permute.xlu0 %1907
    %1909 = vrot.lane.b32.xlu0 %v1606, 127
    %v1910 = vpop.permute.xlu0 %1909
    %1917 = vrot.lane.b32.xlu0 %v1601, 18
    %v1918 = vpop.permute.xlu0 %1917
    %1919 = vrot.lane.b32.xlu0 %v1602, 18
    %v1920 = vpop.permute.xlu0 %1919
    %1921 = vrot.lane.b32.xlu0 %v1603, 18
    %v1922 = vpop.permute.xlu0 %1921
    %1923 = vrot.lane.b32.xlu0 %v1604, 18
    %v1924 = vpop.permute.xlu0 %1923
    %1925 = vrot.lane.b32.xlu0 %v1605, 18
    %v1926 = vpop.permute.xlu0 %1925
    %1927 = vrot.lane.b32.xlu0 %v1606, 18
    %v1928 = vpop.permute.xlu0 %1927
    %1935 = vrot.lane.b32.xlu0 %v1601, 37
    %v1936 = vpop.permute.xlu0 %1935
    %1937 = vrot.lane.b32.xlu0 %v1602, 37
    %v1938 = vpop.permute.xlu0 %1937
    %1939 = vrot.lane.b32.xlu0 %v1603, 37
    %v1940 = vpop.permute.xlu0 %1939
    %1941 = vrot.lane.b32.xlu0 %v1604, 37
    %v1942 = vpop.permute.xlu0 %1941
    %1943 = vrot.lane.b32.xlu0 %v1605, 37
    %v1944 = vpop.permute.xlu0 %1943
    %1945 = vrot.lane.b32.xlu0 %v1606, 37
    %v1946 = vpop.permute.xlu0 %1945
    %1953 = vrot.lane.b32.xlu0 %v1601, 56
    %v1954 = vpop.permute.xlu0 %1953
    %1955 = vrot.lane.b32.xlu0 %v1602, 56
    %v1956 = vpop.permute.xlu0 %1955
    %1957 = vrot.lane.b32.xlu0 %v1603, 56
    %v1958 = vpop.permute.xlu0 %1957
    %1959 = vrot.lane.b32.xlu0 %v1604, 56
    %v1960 = vpop.permute.xlu0 %1959
    %1961 = vrot.lane.b32.xlu0 %v1605, 56
    %v1962 = vpop.permute.xlu0 %1961
    %1963 = vrot.lane.b32.xlu0 %v1606, 56
    %v1964 = vpop.permute.xlu0 %1963
    %1971 = vrot.lane.b32.xlu0 %v1601, 75
    %v1972 = vpop.permute.xlu0 %1971
    %1973 = vrot.lane.b32.xlu0 %v1602, 75
    %v1974 = vpop.permute.xlu0 %1973
    %1975 = vrot.lane.b32.xlu0 %v1603, 75
    %v1976 = vpop.permute.xlu0 %1975
    %1977 = vrot.lane.b32.xlu0 %v1604, 75
    %v1978 = vpop.permute.xlu0 %1977
    %1979 = vrot.lane.b32.xlu0 %v1605, 75
    %v1980 = vpop.permute.xlu0 %1979
    %1981 = vrot.lane.b32.xlu0 %v1606, 75
    %v1982 = vpop.permute.xlu0 %1981
    %1989 = vrot.lane.b32.xlu0 %v1601, 94
    %v1990 = vpop.permute.xlu0 %1989
    %1991 = vrot.lane.b32.xlu0 %v1602, 94
    %v1992 = vpop.permute.xlu0 %1991
    %1993 = vrot.lane.b32.xlu0 %v1603, 94
    %v1994 = vpop.permute.xlu0 %1993
    %1995 = vrot.lane.b32.xlu0 %v1604, 94
    %v1996 = vpop.permute.xlu0 %1995
    %1997 = vrot.lane.b32.xlu0 %v1605, 94
    %v1998 = vpop.permute.xlu0 %1997
    %1999 = vrot.lane.b32.xlu0 %v1606, 94
    %v2000 = vpop.permute.xlu0 %1999
    %2007 = vrot.lane.b32.xlu0 %v1601, 113
    %v2008 = vpop.permute.xlu0 %2007
    %2009 = vrot.lane.b32.xlu0 %v1602, 113
    %v2010 = vpop.permute.xlu0 %2009
    %2011 = vrot.lane.b32.xlu0 %v1603, 113
    %v2012 = vpop.permute.xlu0 %2011
    %2013 = vrot.lane.b32.xlu0 %v1604, 113
    %v2014 = vpop.permute.xlu0 %2013
    %2015 = vrot.lane.b32.xlu0 %v1605, 113
    %v2016 = vpop.permute.xlu0 %2015
    %2017 = vrot.lane.b32.xlu0 %v1606, 113
    %v2018 = vpop.permute.xlu0 %2017
    %2025 = vrot.lane.b32.xlu0 %v1601, 4
    %v2026 = vpop.permute.xlu0 %2025
    %2027 = vrot.lane.b32.xlu0 %v1602, 4
    %v2028 = vpop.permute.xlu0 %2027
    %2029 = vrot.lane.b32.xlu0 %v1603, 4
    %v2030 = vpop.permute.xlu0 %2029
    %2031 = vrot.lane.b32.xlu0 %v1604, 4
    %v2032 = vpop.permute.xlu0 %2031
    %2033 = vrot.lane.b32.xlu0 %v1605, 4
    %v2034 = vpop.permute.xlu0 %2033
    %2035 = vrot.lane.b32.xlu0 %v1606, 4
    %v2036 = vpop.permute.xlu0 %2035
    %v2043 = vsel %vm316, %v1900, %v1918
    %v2044 = vsel %vm316, %v1902, %v1920
    %v2045 = vsel %vm316, %v1904, %v1922
    %v2046 = vsel %vm316, %v1906, %v1924
    %v2047 = vsel %vm316, %v1908, %v1926
    %v2048 = vsel %vm316, %v1910, %v1928
    %v2049 = vsel %vm323, %v2043, %v1936
    %v2050 = vsel %vm323, %v2044, %v1938
    %v2051 = vsel %vm323, %v2045, %v1940
    %v2052 = vsel %vm323, %v2046, %v1942
    %v2053 = vsel %vm323, %v2047, %v1944
    %v2054 = vsel %vm323, %v2048, %v1946
    %v2055 = vsel %vm330, %v2049, %v1954
    %v2056 = vsel %vm330, %v2050, %v1956
    %v2057 = vsel %vm330, %v2051, %v1958
    %v2058 = vsel %vm330, %v2052, %v1960
    %v2059 = vsel %vm330, %v2053, %v1962
    %v2060 = vsel %vm330, %v2054, %v1964
    %v2061 = vsel %vm337, %v2055, %v1972
    %v2062 = vsel %vm337, %v2056, %v1974
    %v2063 = vsel %vm337, %v2057, %v1976
    %v2064 = vsel %vm337, %v2058, %v1978
    %v2065 = vsel %vm337, %v2059, %v1980
    %v2066 = vsel %vm337, %v2060, %v1982
    %v2067 = vsel %vm344, %v2061, %v1990
    %v2068 = vsel %vm344, %v2062, %v1992
    %v2069 = vsel %vm344, %v2063, %v1994
    %v2070 = vsel %vm344, %v2064, %v1996
    %v2071 = vsel %vm344, %v2065, %v1998
    %v2072 = vsel %vm344, %v2066, %v2000
    %v2073 = vsel %vm351, %v2067, %v2008
    %v2074 = vsel %vm351, %v2068, %v2010
    %v2075 = vsel %vm351, %v2069, %v2012
    %v2076 = vsel %vm351, %v2070, %v2014
    %v2077 = vsel %vm351, %v2071, %v2016
    %v2078 = vsel %vm351, %v2072, %v2018
    %v2079 = vsel %vm358, %v2008, %v2026
    %v2080 = vsel %vm358, %v2010, %v2028
    %v2081 = vsel %vm358, %v2012, %v2030
    %v2082 = vsel %vm358, %v2014, %v2032
    %v2083 = vsel %vm358, %v2016, %v2034
    %v2084 = vsel %vm358, %v2018, %v2036
    %s2085 = scalar_lea.vmem %s3, 18
    %v2086 = vld [vmem:[%s2085] sm:$0x3]
    %v2088 = vlaneseq
    %v2089 = vshrl.u32 %v2088, 7
    %v2090 = vsub.s32 0, %v2089
    %v2091 = vrot.slane %v2086, %v2090
    %v2092 = vlaneseq
    %v2093 = vshrl.u32 %v2092, 7
    %v2094 = vsub.s32 1, %v2093
    %v2095 = vrot.slane %v2086, %v2094
    %v2098 = vmul.f32 %v2073, %v2091
    %v2099 = vmul.f32 %v2079, %v2095
    %v2100 = vmul.f32 %v2074, %v2091
    %v2101 = vmul.f32 %v2080, %v2095
    %v2102 = vmul.f32 %v2075, %v2091
    %v2103 = vmul.f32 %v2081, %v2095
    %v2104 = vmul.f32 %v2076, %v2091
    %v2105 = vmul.f32 %v2082, %v2095
    %v2106 = vmul.f32 %v2077, %v2091
    %v2107 = vmul.f32 %v2083, %v2095
    %v2108 = vmul.f32 %v2078, %v2091
    %v2109 = vmul.f32 %v2084, %v2095
    %v2110 = vadd.f32 %v1887, %v2098
    %v2111 = vadd.f32 %v1888, %v2099
    %v2112 = vadd.f32 %v1889, %v2100
    %v2113 = vadd.f32 %v1890, %v2101
    %v2114 = vadd.f32 %v1891, %v2102
    %v2115 = vadd.f32 %v1892, %v2103
    %v2116 = vadd.f32 %v1893, %v2104
    %v2117 = vadd.f32 %v1894, %v2105
    %v2118 = vadd.f32 %v1895, %v2106
    %v2119 = vadd.f32 %v1896, %v2107
    %v2120 = vadd.f32 %v1897, %v2108
    %v2121 = vadd.f32 %v1898, %v2109
    %s2122 = scalar_lea.vmem %s3, 22
    %v2123 = vld [vmem:[%s2122] sm:$0x3]
    %v2125 = vlaneseq
    %v2126 = vshrl.u32 %v2125, 7
    %v2127 = vsub.s32 0, %v2126
    %v2128 = vrot.slane %v2123, %v2127
    %v2129 = vlaneseq
    %v2130 = vshrl.u32 %v2129, 7
    %v2131 = vsub.s32 1, %v2130
    %v2132 = vrot.slane %v2123, %v2131
    %v2135 = vmul.f32 %v2073, %v2128
    %v2136 = vmul.f32 %v2079, %v2132
    %v2137 = vmul.f32 %v2074, %v2128
    %v2138 = vmul.f32 %v2080, %v2132
    %v2139 = vmul.f32 %v2075, %v2128
    %v2140 = vmul.f32 %v2081, %v2132
    %v2141 = vmul.f32 %v2076, %v2128
    %v2142 = vmul.f32 %v2082, %v2132
    %v2143 = vmul.f32 %v2077, %v2128
    %v2144 = vmul.f32 %v2083, %v2132
    %v2145 = vmul.f32 %v2078, %v2128
    %v2146 = vmul.f32 %v2084, %v2132
    %v2159 = vrot.slane %v2135, 1
    %v2160 = vrot.slane %v2137, 1
    %v2161 = vsel %vm438, %v2159, %v2160
    %v2162 = vrot.slane %v2136, 1
    %v2163 = vrot.slane %v2138, 1
    %v2164 = vsel %vm438, %v2162, %v2163
    %v2165 = vrot.slane %v2139, 1
    %v2166 = vsel %vm438, %v2160, %v2165
    %v2167 = vrot.slane %v2140, 1
    %v2168 = vsel %vm438, %v2163, %v2167
    %v2169 = vrot.slane %v2141, 1
    %v2170 = vrot.slane %v2143, 1
    %v2171 = vsel %vm438, %v2169, %v2170
    %v2172 = vrot.slane %v2142, 1
    %v2173 = vrot.slane %v2144, 1
    %v2174 = vsel %vm438, %v2172, %v2173
    %v2175 = vrot.slane %v2145, 1
    %v2176 = vsel %vm438, %v2170, %v2175
    %v2177 = vrot.slane %v2146, 1
    %v2178 = vsel %vm438, %v2173, %v2177
    %v2191 = vadd.f32 %v2110, %v2161
    %v2192 = vadd.f32 %v2111, %v2164
    %v2193 = vadd.f32 %v2112, %v2166
    %v2194 = vadd.f32 %v2113, %v2168
    %v2195 = vadd.f32 %v2114, %v2165
    %v2196 = vadd.f32 %v2115, %v2167
    %v2197 = vadd.f32 %v2116, %v2171
    %v2198 = vadd.f32 %v2117, %v2174
    %v2199 = vadd.f32 %v2118, %v2176
    %v2200 = vadd.f32 %v2119, %v2178
    %v2201 = vadd.f32 %v2120, %v2175
    %v2202 = vadd.f32 %v2121, %v2177
    %s2203 = scalar_lea.vmem %s0, 48
    %v2204 = vld [vmem:[%s2203] sm:$0xff]
    %v2205 = vld [vmem:[%s2203 + $0x8] sm:$0xff]
    %s2206 = scalar_lea.vmem %s0, 112
    %v2207 = vld [vmem:[%s2206] sm:$0xff]
    %v2208 = vld [vmem:[%s2206 + $0x8] sm:$0xff]
    %v2209 = vsel %vm75, %v2204, 0.0
    %v2210 = vsel %vm75, %v2205, 0.0
    %v2211 = vadd.f32 %v2209, %v2210
    %2212 = vadd.xlane.f32.xlu0 %v2211
    %v2213 = vpop.xlane.xlu0 %2212
    %v2214 = vrot.slane %v2213, 4
    %v2215 = vadd.f32 %v2213, %v2214
    %v2216 = vrot.slane %v2215, 2
    %v2217 = vadd.f32 %v2215, %v2216
    %v2218 = vrot.slane %v2217, 1
    %v2219 = vadd.f32 %v2217, %v2218
    %s2220 = vtos %v2219
    %s2221 = sadd.f32 %s2220, 0.0
    %v2222 = vsel %vm75, %v2207, 0.0
    %v2223 = vsel %vm75, %v2208, 0.0
    %v2224 = vadd.f32 %v2222, %v2223
    %2225 = vadd.xlane.f32.xlu0 %v2224
    %v2226 = vpop.xlane.xlu0 %2225
    %v2227 = vrot.slane %v2226, 4
    %v2228 = vadd.f32 %v2226, %v2227
    %v2229 = vrot.slane %v2228, 2
    %v2230 = vadd.f32 %v2228, %v2229
    %v2231 = vrot.slane %v2230, 1
    %v2232 = vadd.f32 %v2230, %v2231
    %s2233 = vtos %v2232
    %s2234 = sadd.f32 %s2221, %s2233
    %s2235 = smul.f32 %s2234, 0.001953125
    %v2236 = vstv %s2235
    %v2237 = vsub.f32 %v2204, %v2236
    %v2238 = vsub.f32 %v2205, %v2236
    %v2239 = vsub.f32 %v2207, %v2236
    %v2240 = vsub.f32 %v2208, %v2236
    %v2241 = vmul.f32 %v2237, %v2237
    %v2242 = vmul.f32 %v2238, %v2238
    %v2243 = vsel %vm75, %v2241, 0.0
    %v2244 = vsel %vm75, %v2242, 0.0
    %v2245 = vadd.f32 %v2243, %v2244
    %2246 = vadd.xlane.f32.xlu0 %v2245
    %v2247 = vpop.xlane.xlu0 %2246
    %v2248 = vrot.slane %v2247, 4
    %v2249 = vadd.f32 %v2247, %v2248
    %v2250 = vrot.slane %v2249, 2
    %v2251 = vadd.f32 %v2249, %v2250
    %v2252 = vrot.slane %v2251, 1
    %v2253 = vadd.f32 %v2251, %v2252
    %s2254 = vtos %v2253
    %s2255 = sadd.f32 %s2254, 0.0
    %v2256 = vmul.f32 %v2239, %v2239
    %v2257 = vmul.f32 %v2240, %v2240
    %v2258 = vsel %vm75, %v2256, 0.0
    %v2259 = vsel %vm75, %v2257, 0.0
    %v2260 = vadd.f32 %v2258, %v2259
    %2261 = vadd.xlane.f32.xlu0 %v2260
    %v2262 = vpop.xlane.xlu0 %2261
    %v2263 = vrot.slane %v2262, 4
    %v2264 = vadd.f32 %v2262, %v2263
    %v2265 = vrot.slane %v2264, 2
    %v2266 = vadd.f32 %v2264, %v2265
    %v2267 = vrot.slane %v2266, 1
    %v2268 = vadd.f32 %v2266, %v2267
    %s2269 = vtos %v2268
    %s2270 = sadd.f32 %s2255, %s2269
    %s2271 = smul.f32 %s2270, 0.001953125
    %s2272 = sld [smem:[#allocation4 + $0x3]]
    %s2273 = sadd.f32 %s2271, 1e-05
    %v2274 = vstv %s2273
    %v2275 = vrsqrt.pop %v2274
    %s2276 = vtos %v2275
    %s2277 = smul.f32 %s2272, %s2276
    %s2278 = sld [smem:[#allocation6 + $0x3]]
    %v2279 = vstv %s2277
    %v2280 = vmul.f32 %v2237, %v2279
    %v2281 = vmul.f32 %v2238, %v2279
    %v2282 = vstv %s2278
    %v2283 = vadd.f32 %v2280, %v2282
    %v2284 = vadd.f32 %v2281, %v2282
    %2287 = vrot.lane.b32.xlu0 %v2283, 2
    %v2288 = vpop.permute.xlu0 %2287
    %2289 = vrot.lane.b32.xlu0 %v2284, 2
    %v2290 = vpop.permute.xlu0 %2289
    %2293 = vst.msk [vmem:[#allocation2 + $0x2] sm:$0xff] %vm160, %v2288
    %2294 = vst.msk [vmem:[#allocation2 + $0xa] sm:$0xff] %vm160, %v2290
    %v2295 = vmul.f32 %v2239, %v2279
    %v2296 = vmul.f32 %v2240, %v2279
    %v2297 = vadd.f32 %v2295, %v2282
    %v2298 = vadd.f32 %v2296, %v2282
    %2301 = vrot.lane.b32.xlu0 %v2297, 2
    %v2302 = vpop.permute.xlu0 %2301
    %2303 = vrot.lane.b32.xlu0 %v2298, 2
    %v2304 = vpop.permute.xlu0 %2303
    %2307 = vst.msk [vmem:[%s175 + $0x2] sm:$0xff] %vm160, %v2302
    %2308 = vst.msk [vmem:[%s175 + $0xa] sm:$0xff] %vm160, %v2304
    %v2309 = vld [vmem:[#allocation2] sm:$0xff]
    %v2310 = vld [vmem:[#allocation2 + $0x8] sm:$0xff]
    %v2311 = vld [vmem:[#allocation2 + $0x10] sm:$0xf]
    %v2312 = vld [vmem:[#allocation2 + $0x18] sm:$0xff]
    %v2313 = vld [vmem:[#allocation2 + $0x20] sm:$0xff]
    %v2314 = vld [vmem:[#allocation2 + $0x28] sm:$0xf]
    %2321 = vrot.lane.b32.xlu0 %v2309, 19
    %v2322 = vpop.permute.xlu0 %2321
    %2323 = vrot.lane.b32.xlu0 %v2310, 19
    %v2324 = vpop.permute.xlu0 %2323
    %2325 = vrot.lane.b32.xlu0 %v2311, 19
    %v2326 = vpop.permute.xlu0 %2325
    %2327 = vrot.lane.b32.xlu0 %v2312, 19
    %v2328 = vpop.permute.xlu0 %2327
    %2329 = vrot.lane.b32.xlu0 %v2313, 19
    %v2330 = vpop.permute.xlu0 %2329
    %2331 = vrot.lane.b32.xlu0 %v2314, 19
    %v2332 = vpop.permute.xlu0 %2331
    %2339 = vrot.lane.b32.xlu0 %v2309, 38
    %v2340 = vpop.permute.xlu0 %2339
    %2341 = vrot.lane.b32.xlu0 %v2310, 38
    %v2342 = vpop.permute.xlu0 %2341
    %2343 = vrot.lane.b32.xlu0 %v2311, 38
    %v2344 = vpop.permute.xlu0 %2343
    %2345 = vrot.lane.b32.xlu0 %v2312, 38
    %v2346 = vpop.permute.xlu0 %2345
    %2347 = vrot.lane.b32.xlu0 %v2313, 38
    %v2348 = vpop.permute.xlu0 %2347
    %2349 = vrot.lane.b32.xlu0 %v2314, 38
    %v2350 = vpop.permute.xlu0 %2349
    %2357 = vrot.lane.b32.xlu0 %v2309, 57
    %v2358 = vpop.permute.xlu0 %2357
    %2359 = vrot.lane.b32.xlu0 %v2310, 57
    %v2360 = vpop.permute.xlu0 %2359
    %2361 = vrot.lane.b32.xlu0 %v2311, 57
    %v2362 = vpop.permute.xlu0 %2361
    %2363 = vrot.lane.b32.xlu0 %v2312, 57
    %v2364 = vpop.permute.xlu0 %2363
    %2365 = vrot.lane.b32.xlu0 %v2313, 57
    %v2366 = vpop.permute.xlu0 %2365
    %2367 = vrot.lane.b32.xlu0 %v2314, 57
    %v2368 = vpop.permute.xlu0 %2367
    %2375 = vrot.lane.b32.xlu0 %v2309, 76
    %v2376 = vpop.permute.xlu0 %2375
    %2377 = vrot.lane.b32.xlu0 %v2310, 76
    %v2378 = vpop.permute.xlu0 %2377
    %2379 = vrot.lane.b32.xlu0 %v2311, 76
    %v2380 = vpop.permute.xlu0 %2379
    %2381 = vrot.lane.b32.xlu0 %v2312, 76
    %v2382 = vpop.permute.xlu0 %2381
    %2383 = vrot.lane.b32.xlu0 %v2313, 76
    %v2384 = vpop.permute.xlu0 %2383
    %2385 = vrot.lane.b32.xlu0 %v2314, 76
    %v2386 = vpop.permute.xlu0 %2385
    %2393 = vrot.lane.b32.xlu0 %v2309, 95
    %v2394 = vpop.permute.xlu0 %2393
    %2395 = vrot.lane.b32.xlu0 %v2310, 95
    %v2396 = vpop.permute.xlu0 %2395
    %2397 = vrot.lane.b32.xlu0 %v2311, 95
    %v2398 = vpop.permute.xlu0 %2397
    %2399 = vrot.lane.b32.xlu0 %v2312, 95
    %v2400 = vpop.permute.xlu0 %2399
    %2401 = vrot.lane.b32.xlu0 %v2313, 95
    %v2402 = vpop.permute.xlu0 %2401
    %2403 = vrot.lane.b32.xlu0 %v2314, 95
    %v2404 = vpop.permute.xlu0 %2403
    %2411 = vrot.lane.b32.xlu0 %v2309, 114
    %v2412 = vpop.permute.xlu0 %2411
    %2413 = vrot.lane.b32.xlu0 %v2310, 114
    %v2414 = vpop.permute.xlu0 %2413
    %2415 = vrot.lane.b32.xlu0 %v2311, 114
    %v2416 = vpop.permute.xlu0 %2415
    %2417 = vrot.lane.b32.xlu0 %v2312, 114
    %v2418 = vpop.permute.xlu0 %2417
    %2419 = vrot.lane.b32.xlu0 %v2313, 114
    %v2420 = vpop.permute.xlu0 %2419
    %2421 = vrot.lane.b32.xlu0 %v2314, 114
    %v2422 = vpop.permute.xlu0 %2421
    %2429 = vrot.lane.b32.xlu0 %v2309, 5
    %v2430 = vpop.permute.xlu0 %2429
    %2431 = vrot.lane.b32.xlu0 %v2310, 5
    %v2432 = vpop.permute.xlu0 %2431
    %2433 = vrot.lane.b32.xlu0 %v2311, 5
    %v2434 = vpop.permute.xlu0 %2433
    %2435 = vrot.lane.b32.xlu0 %v2312, 5
    %v2436 = vpop.permute.xlu0 %2435
    %2437 = vrot.lane.b32.xlu0 %v2313, 5
    %v2438 = vpop.permute.xlu0 %2437
    %2439 = vrot.lane.b32.xlu0 %v2314, 5
    %v2440 = vpop.permute.xlu0 %2439
    %v2447 = vsel %vm316, %v2309, %v2322
    %v2448 = vsel %vm316, %v2310, %v2324
    %v2449 = vsel %vm316, %v2311, %v2326
    %v2450 = vsel %vm316, %v2312, %v2328
    %v2451 = vsel %vm316, %v2313, %v2330
    %v2452 = vsel %vm316, %v2314, %v2332
    %v2453 = vsel %vm323, %v2447, %v2340
    %v2454 = vsel %vm323, %v2448, %v2342
    %v2455 = vsel %vm323, %v2449, %v2344
    %v2456 = vsel %vm323, %v2450, %v2346
    %v2457 = vsel %vm323, %v2451, %v2348
    %v2458 = vsel %vm323, %v2452, %v2350
    %v2459 = vsel %vm330, %v2453, %v2358
    %v2460 = vsel %vm330, %v2454, %v2360
    %v2461 = vsel %vm330, %v2455, %v2362
    %v2462 = vsel %vm330, %v2456, %v2364
    %v2463 = vsel %vm330, %v2457, %v2366
    %v2464 = vsel %vm330, %v2458, %v2368
    %v2465 = vsel %vm337, %v2459, %v2376
    %v2466 = vsel %vm337, %v2460, %v2378
    %v2467 = vsel %vm337, %v2461, %v2380
    %v2468 = vsel %vm337, %v2462, %v2382
    %v2469 = vsel %vm337, %v2463, %v2384
    %v2470 = vsel %vm337, %v2464, %v2386
    %v2471 = vsel %vm344, %v2465, %v2394
    %v2472 = vsel %vm344, %v2466, %v2396
    %v2473 = vsel %vm344, %v2467, %v2398
    %v2474 = vsel %vm344, %v2468, %v2400
    %v2475 = vsel %vm344, %v2469, %v2402
    %v2476 = vsel %vm344, %v2470, %v2404
    %v2477 = vsel %vm351, %v2471, %v2412
    %v2478 = vsel %vm351, %v2472, %v2414
    %v2479 = vsel %vm351, %v2473, %v2416
    %v2480 = vsel %vm351, %v2474, %v2418
    %v2481 = vsel %vm351, %v2475, %v2420
    %v2482 = vsel %vm351, %v2476, %v2422
    %v2483 = vsel %vm358, %v2412, %v2430
    %v2484 = vsel %vm358, %v2414, %v2432
    %v2485 = vsel %vm358, %v2416, %v2434
    %v2486 = vsel %vm358, %v2418, %v2436
    %v2487 = vsel %vm358, %v2420, %v2438
    %v2488 = vsel %vm358, %v2422, %v2440
    %s2489 = scalar_lea.vmem %s3, 24
    %v2490 = vld [vmem:[%s2489] sm:$0x3]
    %v2492 = vlaneseq
    %v2493 = vshrl.u32 %v2492, 7
    %v2494 = vsub.s32 0, %v2493
    %v2495 = vrot.slane %v2490, %v2494
    %v2496 = vlaneseq
    %v2497 = vshrl.u32 %v2496, 7
    %v2498 = vsub.s32 1, %v2497
    %v2499 = vrot.slane %v2490, %v2498
    %v2502 = vmul.f32 %v2477, %v2495
    %v2503 = vmul.f32 %v2483, %v2499
    %v2504 = vmul.f32 %v2478, %v2495
    %v2505 = vmul.f32 %v2484, %v2499
    %v2506 = vmul.f32 %v2479, %v2495
    %v2507 = vmul.f32 %v2485, %v2499
    %v2508 = vmul.f32 %v2480, %v2495
    %v2509 = vmul.f32 %v2486, %v2499
    %v2510 = vmul.f32 %v2481, %v2495
    %v2511 = vmul.f32 %v2487, %v2499
    %v2512 = vmul.f32 %v2482, %v2495
    %v2513 = vmul.f32 %v2488, %v2499
    %v2514 = vadd.f32 %v2191, %v2502
    %v2515 = vadd.f32 %v2192, %v2503
    %v2516 = vadd.f32 %v2193, %v2504
    %v2517 = vadd.f32 %v2194, %v2505
    %v2518 = vadd.f32 %v2195, %v2506
    %v2519 = vadd.f32 %v2196, %v2507
    %v2520 = vadd.f32 %v2197, %v2508
    %v2521 = vadd.f32 %v2198, %v2509
    %v2522 = vadd.f32 %v2199, %v2510
    %v2523 = vadd.f32 %v2200, %v2511
    %v2524 = vadd.f32 %v2201, %v2512
    %v2525 = vadd.f32 %v2202, %v2513
    %s2526 = scalar_lea.vmem %s3, 28
    %v2527 = vld [vmem:[%s2526] sm:$0x3]
    %v2529 = vlaneseq
    %v2530 = vshrl.u32 %v2529, 7
    %v2531 = vsub.s32 0, %v2530
    %v2532 = vrot.slane %v2527, %v2531
    %v2533 = vlaneseq
    %v2534 = vshrl.u32 %v2533, 7
    %v2535 = vsub.s32 1, %v2534
    %v2536 = vrot.slane %v2527, %v2535
    %v2539 = vmul.f32 %v2477, %v2532
    %v2540 = vmul.f32 %v2483, %v2536
    %v2541 = vmul.f32 %v2478, %v2532
    %v2542 = vmul.f32 %v2484, %v2536
    %v2543 = vmul.f32 %v2479, %v2532
    %v2544 = vmul.f32 %v2485, %v2536
    %v2545 = vmul.f32 %v2480, %v2532
    %v2546 = vmul.f32 %v2486, %v2536
    %v2547 = vmul.f32 %v2481, %v2532
    %v2548 = vmul.f32 %v2487, %v2536
    %v2549 = vmul.f32 %v2482, %v2532
    %v2550 = vmul.f32 %v2488, %v2536
    %v2563 = vrot.slane %v2539, 1
    %v2564 = vrot.slane %v2541, 1
    %v2565 = vsel %vm438, %v2563, %v2564
    %v2566 = vrot.slane %v2540, 1
    %v2567 = vrot.slane %v2542, 1
    %v2568 = vsel %vm438, %v2566, %v2567
    %v2569 = vrot.slane %v2543, 1
    %v2570 = vsel %vm438, %v2564, %v2569
    %v2571 = vrot.slane %v2544, 1
    %v2572 = vsel %vm438, %v2567, %v2571
    %v2573 = vrot.slane %v2545, 1
    %v2574 = vrot.slane %v2547, 1
    %v2575 = vsel %vm438, %v2573, %v2574
    %v2576 = vrot.slane %v2546, 1
    %v2577 = vrot.slane %v2548, 1
    %v2578 = vsel %vm438, %v2576, %v2577
    %v2579 = vrot.slane %v2549, 1
    %v2580 = vsel %vm438, %v2574, %v2579
    %v2581 = vrot.slane %v2550, 1
    %v2582 = vsel %vm438, %v2577, %v2581
    %v2595 = vadd.f32 %v2514, %v2565
    %v2596 = vadd.f32 %v2515, %v2568
    %v2597 = vadd.f32 %v2516, %v2570
    %v2598 = vadd.f32 %v2517, %v2572
    %v2599 = vadd.f32 %v2518, %v2569
    %v2600 = vadd.f32 %v2519, %v2571
    %v2601 = vadd.f32 %v2520, %v2575
    %v2602 = vadd.f32 %v2521, %v2578
    %v2603 = vadd.f32 %v2522, %v2580
    %v2604 = vadd.f32 %v2523, %v2582
    %v2605 = vadd.f32 %v2524, %v2579
    %v2606 = vadd.f32 %v2525, %v2581
    %2607 = vrot.lane.b32.xlu0 %v2309, 127
    %v2608 = vpop.permute.xlu0 %2607
    %2609 = vrot.lane.b32.xlu0 %v2310, 127
    %v2610 = vpop.permute.xlu0 %2609
    %2611 = vrot.lane.b32.xlu0 %v2311, 127
    %v2612 = vpop.permute.xlu0 %2611
    %2613 = vrot.lane.b32.xlu0 %v2312, 127
    %v2614 = vpop.permute.xlu0 %2613
    %2615 = vrot.lane.b32.xlu0 %v2313, 127
    %v2616 = vpop.permute.xlu0 %2615
    %2617 = vrot.lane.b32.xlu0 %v2314, 127
    %v2618 = vpop.permute.xlu0 %2617
    %2625 = vrot.lane.b32.xlu0 %v2309, 18
    %v2626 = vpop.permute.xlu0 %2625
    %2627 = vrot.lane.b32.xlu0 %v2310, 18
    %v2628 = vpop.permute.xlu0 %2627
    %2629 = vrot.lane.b32.xlu0 %v2311, 18
    %v2630 = vpop.permute.xlu0 %2629
    %2631 = vrot.lane.b32.xlu0 %v2312, 18
    %v2632 = vpop.permute.xlu0 %2631
    %2633 = vrot.lane.b32.xlu0 %v2313, 18
    %v2634 = vpop.permute.xlu0 %2633
    %2635 = vrot.lane.b32.xlu0 %v2314, 18
    %v2636 = vpop.permute.xlu0 %2635
    %2643 = vrot.lane.b32.xlu0 %v2309, 37
    %v2644 = vpop.permute.xlu0 %2643
    %2645 = vrot.lane.b32.xlu0 %v2310, 37
    %v2646 = vpop.permute.xlu0 %2645
    %2647 = vrot.lane.b32.xlu0 %v2311, 37
    %v2648 = vpop.permute.xlu0 %2647
    %2649 = vrot.lane.b32.xlu0 %v2312, 37
    %v2650 = vpop.permute.xlu0 %2649
    %2651 = vrot.lane.b32.xlu0 %v2313, 37
    %v2652 = vpop.permute.xlu0 %2651
    %2653 = vrot.lane.b32.xlu0 %v2314, 37
    %v2654 = vpop.permute.xlu0 %2653
    %2661 = vrot.lane.b32.xlu0 %v2309, 56
    %v2662 = vpop.permute.xlu0 %2661
    %2663 = vrot.lane.b32.xlu0 %v2310, 56
    %v2664 = vpop.permute.xlu0 %2663
    %2665 = vrot.lane.b32.xlu0 %v2311, 56
    %v2666 = vpop.permute.xlu0 %2665
    %2667 = vrot.lane.b32.xlu0 %v2312, 56
    %v2668 = vpop.permute.xlu0 %2667
    %2669 = vrot.lane.b32.xlu0 %v2313, 56
    %v2670 = vpop.permute.xlu0 %2669
    %2671 = vrot.lane.b32.xlu0 %v2314, 56
    %v2672 = vpop.permute.xlu0 %2671
    %2679 = vrot.lane.b32.xlu0 %v2309, 75
    %v2680 = vpop.permute.xlu0 %2679
    %2681 = vrot.lane.b32.xlu0 %v2310, 75
    %v2682 = vpop.permute.xlu0 %2681
    %2683 = vrot.lane.b32.xlu0 %v2311, 75
    %v2684 = vpop.permute.xlu0 %2683
    %2685 = vrot.lane.b32.xlu0 %v2312, 75
    %v2686 = vpop.permute.xlu0 %2685
    %2687 = vrot.lane.b32.xlu0 %v2313, 75
    %v2688 = vpop.permute.xlu0 %2687
    %2689 = vrot.lane.b32.xlu0 %v2314, 75
    %v2690 = vpop.permute.xlu0 %2689
    %2697 = vrot.lane.b32.xlu0 %v2309, 94
    %v2698 = vpop.permute.xlu0 %2697
    %2699 = vrot.lane.b32.xlu0 %v2310, 94
    %v2700 = vpop.permute.xlu0 %2699
    %2701 = vrot.lane.b32.xlu0 %v2311, 94
    %v2702 = vpop.permute.xlu0 %2701
    %2703 = vrot.lane.b32.xlu0 %v2312, 94
    %v2704 = vpop.permute.xlu0 %2703
    %2705 = vrot.lane.b32.xlu0 %v2313, 94
    %v2706 = vpop.permute.xlu0 %2705
    %2707 = vrot.lane.b32.xlu0 %v2314, 94
    %v2708 = vpop.permute.xlu0 %2707
    %2715 = vrot.lane.b32.xlu0 %v2309, 113
    %v2716 = vpop.permute.xlu0 %2715
    %2717 = vrot.lane.b32.xlu0 %v2310, 113
    %v2718 = vpop.permute.xlu0 %2717
    %2719 = vrot.lane.b32.xlu0 %v2311, 113
    %v2720 = vpop.permute.xlu0 %2719
    %2721 = vrot.lane.b32.xlu0 %v2312, 113
    %v2722 = vpop.permute.xlu0 %2721
    %2723 = vrot.lane.b32.xlu0 %v2313, 113
    %v2724 = vpop.permute.xlu0 %2723
    %2725 = vrot.lane.b32.xlu0 %v2314, 113
    %v2726 = vpop.permute.xlu0 %2725
    %2733 = vrot.lane.b32.xlu0 %v2309, 4
    %v2734 = vpop.permute.xlu0 %2733
    %2735 = vrot.lane.b32.xlu0 %v2310, 4
    %v2736 = vpop.permute.xlu0 %2735
    %2737 = vrot.lane.b32.xlu0 %v2311, 4
    %v2738 = vpop.permute.xlu0 %2737
    %2739 = vrot.lane.b32.xlu0 %v2312, 4
    %v2740 = vpop.permute.xlu0 %2739
    %2741 = vrot.lane.b32.xlu0 %v2313, 4
    %v2742 = vpop.permute.xlu0 %2741
    %2743 = vrot.lane.b32.xlu0 %v2314, 4
    %v2744 = vpop.permute.xlu0 %2743
    %v2751 = vsel %vm316, %v2608, %v2626
    %v2752 = vsel %vm316, %v2610, %v2628
    %v2753 = vsel %vm316, %v2612, %v2630
    %v2754 = vsel %vm316, %v2614, %v2632
    %v2755 = vsel %vm316, %v2616, %v2634
    %v2756 = vsel %vm316, %v2618, %v2636
    %v2757 = vsel %vm323, %v2751, %v2644
    %v2758 = vsel %vm323, %v2752, %v2646
    %v2759 = vsel %vm323, %v2753, %v2648
    %v2760 = vsel %vm323, %v2754, %v2650
    %v2761 = vsel %vm323, %v2755, %v2652
    %v2762 = vsel %vm323, %v2756, %v2654
    %v2763 = vsel %vm330, %v2757, %v2662
    %v2764 = vsel %vm330, %v2758, %v2664
    %v2765 = vsel %vm330, %v2759, %v2666
    %v2766 = vsel %vm330, %v2760, %v2668
    %v2767 = vsel %vm330, %v2761, %v2670
    %v2768 = vsel %vm330, %v2762, %v2672
    %v2769 = vsel %vm337, %v2763, %v2680
    %v2770 = vsel %vm337, %v2764, %v2682
    %v2771 = vsel %vm337, %v2765, %v2684
    %v2772 = vsel %vm337, %v2766, %v2686
    %v2773 = vsel %vm337, %v2767, %v2688
    %v2774 = vsel %vm337, %v2768, %v2690
    %v2775 = vsel %vm344, %v2769, %v2698
    %v2776 = vsel %vm344, %v2770, %v2700
    %v2777 = vsel %vm344, %v2771, %v2702
    %v2778 = vsel %vm344, %v2772, %v2704
    %v2779 = vsel %vm344, %v2773, %v2706
    %v2780 = vsel %vm344, %v2774, %v2708
    %v2781 = vsel %vm351, %v2775, %v2716
    %v2782 = vsel %vm351, %v2776, %v2718
    %v2783 = vsel %vm351, %v2777, %v2720
    %v2784 = vsel %vm351, %v2778, %v2722
    %v2785 = vsel %vm351, %v2779, %v2724
    %v2786 = vsel %vm351, %v2780, %v2726
    %v2787 = vsel %vm358, %v2716, %v2734
    %v2788 = vsel %vm358, %v2718, %v2736
    %v2789 = vsel %vm358, %v2720, %v2738
    %v2790 = vsel %vm358, %v2722, %v2740
    %v2791 = vsel %vm358, %v2724, %v2742
    %v2792 = vsel %vm358, %v2726, %v2744
    %s2793 = scalar_lea.vmem %s3, 26
    %v2794 = vld [vmem:[%s2793] sm:$0x3]
    %v2796 = vlaneseq
    %v2797 = vshrl.u32 %v2796, 7
    %v2798 = vsub.s32 0, %v2797
    %v2799 = vrot.slane %v2794, %v2798
    %v2800 = vlaneseq
    %v2801 = vshrl.u32 %v2800, 7
    %v2802 = vsub.s32 1, %v2801
    %v2803 = vrot.slane %v2794, %v2802
    %v2806 = vmul.f32 %v2781, %v2799
    %v2807 = vmul.f32 %v2787, %v2803
    %v2808 = vmul.f32 %v2782, %v2799
    %v2809 = vmul.f32 %v2788, %v2803
    %v2810 = vmul.f32 %v2783, %v2799
    %v2811 = vmul.f32 %v2789, %v2803
    %v2812 = vmul.f32 %v2784, %v2799
    %v2813 = vmul.f32 %v2790, %v2803
    %v2814 = vmul.f32 %v2785, %v2799
    %v2815 = vmul.f32 %v2791, %v2803
    %v2816 = vmul.f32 %v2786, %v2799
    %v2817 = vmul.f32 %v2792, %v2803
    %v2818 = vadd.f32 %v2595, %v2806
    %v2819 = vadd.f32 %v2596, %v2807
    %v2820 = vadd.f32 %v2597, %v2808
    %v2821 = vadd.f32 %v2598, %v2809
    %v2822 = vadd.f32 %v2599, %v2810
    %v2823 = vadd.f32 %v2600, %v2811
    %v2824 = vadd.f32 %v2601, %v2812
    %v2825 = vadd.f32 %v2602, %v2813
    %v2826 = vadd.f32 %v2603, %v2814
    %v2827 = vadd.f32 %v2604, %v2815
    %v2828 = vadd.f32 %v2605, %v2816
    %v2829 = vadd.f32 %v2606, %v2817
    %s2830 = scalar_lea.vmem %s3, 30
    %v2831 = vld [vmem:[%s2830] sm:$0x3]
    %v2833 = vlaneseq
    %v2834 = vshrl.u32 %v2833, 7
    %v2835 = vsub.s32 0, %v2834
    %v2836 = vrot.slane %v2831, %v2835
    %v2837 = vlaneseq
    %v2838 = vshrl.u32 %v2837, 7
    %v2839 = vsub.s32 1, %v2838
    %v2840 = vrot.slane %v2831, %v2839
    %v2843 = vmul.f32 %v2781, %v2836
    %v2844 = vmul.f32 %v2787, %v2840
    %v2845 = vmul.f32 %v2782, %v2836
    %v2846 = vmul.f32 %v2788, %v2840
    %v2847 = vmul.f32 %v2783, %v2836
    %v2848 = vmul.f32 %v2789, %v2840
    %v2849 = vmul.f32 %v2784, %v2836
    %v2850 = vmul.f32 %v2790, %v2840
    %v2851 = vmul.f32 %v2785, %v2836
    %v2852 = vmul.f32 %v2791, %v2840
    %v2853 = vmul.f32 %v2786, %v2836
    %v2854 = vmul.f32 %v2792, %v2840
    %v2867 = vrot.slane %v2843, 1
    %v2868 = vrot.slane %v2845, 1
    %v2869 = vsel %vm438, %v2867, %v2868
    %v2870 = vrot.slane %v2844, 1
    %v2871 = vrot.slane %v2846, 1
    %v2872 = vsel %vm438, %v2870, %v2871
    %v2873 = vrot.slane %v2847, 1
    %v2874 = vsel %vm438, %v2868, %v2873
    %v2875 = vrot.slane %v2848, 1
    %v2876 = vsel %vm438, %v2871, %v2875
    %v2877 = vrot.slane %v2849, 1
    %v2878 = vrot.slane %v2851, 1
    %v2879 = vsel %vm438, %v2877, %v2878
    %v2880 = vrot.slane %v2850, 1
    %v2881 = vrot.slane %v2852, 1
    %v2882 = vsel %vm438, %v2880, %v2881
    %v2883 = vrot.slane %v2853, 1
    %v2884 = vsel %vm438, %v2878, %v2883
    %v2885 = vrot.slane %v2854, 1
    %v2886 = vsel %vm438, %v2881, %v2885
    %v2899 = vadd.f32 %v2818, %v2869
    %v2900 = vadd.f32 %v2819, %v2872
    %v2901 = vadd.f32 %v2820, %v2874
    %v2902 = vadd.f32 %v2821, %v2876
    %v2903 = vadd.f32 %v2822, %v2873
    %v2904 = vadd.f32 %v2823, %v2875
    %v2905 = vadd.f32 %v2824, %v2879
    %v2906 = vadd.f32 %v2825, %v2882
    %v2907 = vadd.f32 %v2826, %v2884
    %v2908 = vadd.f32 %v2827, %v2886
    %v2909 = vadd.f32 %v2828, %v2883
    %v2910 = vadd.f32 %v2829, %v2885
    %vm2911 = vcmp.gt.f32.partialorder %v2899, 0.0
    %vm2912 = vcmp.gt.f32.partialorder %v2900, 0.0
    %vm2913 = vcmp.gt.f32.partialorder %v2901, 0.0
    %vm2914 = vcmp.gt.f32.partialorder %v2902, 0.0
    %vm2915 = vcmp.gt.f32.partialorder %v2903, 0.0
    %vm2916 = vcmp.gt.f32.partialorder %v2904, 0.0
    %vm2917 = vcmp.gt.f32.partialorder %v2905, 0.0
    %vm2918 = vcmp.gt.f32.partialorder %v2906, 0.0
    %vm2919 = vcmp.gt.f32.partialorder %v2907, 0.0
    %vm2920 = vcmp.gt.f32.partialorder %v2908, 0.0
    %vm2921 = vcmp.gt.f32.partialorder %v2909, 0.0
    %vm2922 = vcmp.gt.f32.partialorder %v2910, 0.0
    %v2923 = vstv %s49
    %v2924 = vmul.f32 %v2923, %v2899
    %v2925 = vmul.f32 %v2923, %v2900
    %v2926 = vmul.f32 %v2923, %v2901
    %v2927 = vmul.f32 %v2923, %v2902
    %v2928 = vmul.f32 %v2923, %v2903
    %v2929 = vmul.f32 %v2923, %v2904
    %v2930 = vmul.f32 %v2923, %v2905
    %v2931 = vmul.f32 %v2923, %v2906
    %v2932 = vmul.f32 %v2923, %v2907
    %v2933 = vmul.f32 %v2923, %v2908
    %v2934 = vmul.f32 %v2923, %v2909
    %v2935 = vmul.f32 %v2923, %v2910
    %v2936 = vsel %vm2911, %v2899, %v2924
    %v2937 = vsel %vm2912, %v2900, %v2925
    %v2938 = vsel %vm2913, %v2901, %v2926
    %v2939 = vsel %vm2914, %v2902, %v2927
    %v2940 = vsel %vm2915, %v2903, %v2928
    %v2941 = vsel %vm2916, %v2904, %v2929
    %v2942 = vsel %vm2917, %v2905, %v2930
    %v2943 = vsel %vm2918, %v2906, %v2931
    %v2944 = vsel %vm2919, %v2907, %v2932
    %v2945 = vsel %vm2920, %v2908, %v2933
    %v2946 = vsel %vm2921, %v2909, %v2934
    %v2947 = vsel %vm2922, %v2910, %v2935
    %2948 = vst [vmem:[%s6] sm:$0xff] %v2936
    %vm2949 = vcmask 195584
    %2950 = vst.msk [vmem:[%s6 + $0x8] sm:$0xff] %vm2949, %v2937
    %2951 = vst [vmem:[%s6 + $0x10] sm:$0xff] %v2938
    %2952 = vst.msk [vmem:[%s6 + $0x18] sm:$0xff] %vm2949, %v2939
    %2953 = vst [vmem:[%s6 + $0x20] sm:$0x7] %v2940
    %vm2954 = vcmask 190464
    %2955 = vst.msk [vmem:[%s6 + $0x28] sm:$0x7] %vm2954, %v2941
    %2956 = vst [vmem:[%s6 + $0x30] sm:$0xff] %v2942
    %2957 = vst.msk [vmem:[%s6 + $0x38] sm:$0xff] %vm2949, %v2943
    %2958 = vst [vmem:[%s6 + $0x40] sm:$0xff] %v2944
    %2959 = vst.msk [vmem:[%s6 + $0x48] sm:$0xff] %vm2949, %v2945
    %2960 = vst [vmem:[%s6 + $0x50] sm:$0x7] %v2946
    %2961 = vst.msk [vmem:[%s6 + $0x58] sm:$0x7] %vm2954, %v2947
    // Predicated region
    $region34: #{conv_res_forward.1} parent=1 // pred_check
      _
    $region35: #{conv_res_forward.1} parent=1 // pred_check_branch
      %2963 = sbr.rel (0) target = $region37
    $region36: #{conv_res_forward.1} parent=1 // pred_region
      _
    $region37: #{conv_res_forward.1} parent=1 // pred_fallthru
      _
    // Predicated region
    $region38: #{conv_res_forward.1} parent=1 // pred_check
      _
    $region39: #{conv_res_forward.1} parent=1 // pred_check_branch
      %2965 = sbr.rel (0) target = $region41
    $region40: #{conv_res_forward.1} parent=1 // pred_region
      _
    $region41: #{conv_res_forward.1} parent=1 // pred_fallthru
      _
    %2966 = vsyncpa [#allocation5], 1
    %2967 = vsyncpa [#allocation7], 1

</llo_original>
